<compile_context>
chip_gen: v6e
topology: v6e:2x2x1
jax: 0.10.0
libtpu: 0.0.40
codegen_flags: <defaults>
</compile_context>

<pallas_src>
import functools

import jax
import jax.numpy as jnp
from jax.experimental import pallas as pl
from jax.experimental.pallas import tpu as pltpu


def _round_up(n, m):
    return ((n + m - 1) // m) * m


def _sigmoid(x):
    # sigmoid(x) == 0.5 * tanh(0.5 * x) + 0.5 : one EUP op + a VPU fma (vs exp + recip).
    return 0.5 * jnp.tanh(0.5 * x) + 0.5


# -----------------------------------------------------------------------------
# Fused encoder kernel: rnn1 + rnn2 in a single time recurrence, chunked over T.
# -----------------------------------------------------------------------------
def _encoder_kernel(x_ref, wih1_ref, b1_ref, whh1_ref, wih2_ref, b2_ref, whh2_ref,
                    hN_ref, gx1_ref, h1_ref, c1_ref, h2_ref, c2_ref, *, n_feat):
    chunk = pl.program_id(0)
    B_pad, G1 = h1_ref.shape
    G2 = h2_ref.shape[1]
    Tc = gx1_ref.shape[0] // B_pad

    # Zero the carried LSTM state on the first chunk only (scratch persists over grid).
    @pl.when(chunk == 0)
    def _():
        h1_ref[...] = jnp.zeros_like(h1_ref)
        c1_ref[...] = jnp.zeros_like(c1_ref)
        h2_ref[...] = jnp.zeros_like(h2_ref)
        c2_ref[...] = jnp.zeros_like(c2_ref)

    # ---- hoisted layer-1 input projection for this T-chunk -----------------------
    if n_feat <= 8:
        # Tiny feature count: a GEMM whose K dim is mostly zero padding is wasted
        # MXU/DMA; do it on the VPU as broadcast multiplies over the real columns.
        xf = x_ref[...].astype(jnp.float32)
        acc = jnp.zeros((Tc * B_pad, 4 * G1), jnp.float32)
        for k in range(n_feat):
            acc = acc + xf[:, k:k + 1] * wih1_ref[k:k + 1, :].astype(jnp.float32)
        gx1_ref[...] = acc + b1_ref[...]
    else:
        gx1_ref[...] = jnp.dot(x_ref[...], wih1_ref[...],
                               preferred_element_type=jnp.float32) + b1_ref[...]

    # ---- fused rnn1 + rnn2 recurrence over this chunk -----------------------------
    def step(t, carry):
        h1, c1, h2, c2 = carry
        row = pl.multiple_of(t * B_pad, B_pad)

        # layer 1: only the recurrent matmul is on the serial chain (weights fed
        # straight from VMEM, not hoisted into vregs).
        g1 = gx1_ref[pl.ds(row, B_pad), :] + jnp.dot(
            h1.astype(jnp.bfloat16), whh1_ref[...],
            preferred_element_type=jnp.float32)
        i1 = _sigmoid(g1[:, 0 * G1:1 * G1])
        f1 = _sigmoid(g1[:, 1 * G1:2 * G1])
        gg1 = jnp.tanh(g1[:, 2 * G1:3 * G1])
        o1 = _sigmoid(g1[:, 3 * G1:4 * G1])
        c1 = f1 * c1 + i1 * gg1
        h1 = o1 * jnp.tanh(c1)

        # layer 2 fused into the same timestep; its tiny matmuls hide in layer-1 slack.
        h1b = h1.astype(jnp.bfloat16)
        g2 = (jnp.dot(h1b, wih2_ref[...], preferred_element_type=jnp.float32)
              + b2_ref[...]
              + jnp.dot(h2.astype(jnp.bfloat16), whh2_ref[...],
                        preferred_element_type=jnp.float32))
        i2 = _sigmoid(g2[:, 0 * G2:1 * G2])
        f2 = _sigmoid(g2[:, 1 * G2:2 * G2])
        gg2 = jnp.tanh(g2[:, 2 * G2:3 * G2])
        o2 = _sigmoid(g2[:, 3 * G2:4 * G2])
        c2 = f2 * c2 + i2 * gg2
        h2 = o2 * jnp.tanh(c2)
        return (h1, c1, h2, c2)

    init = (h1_ref[...], c1_ref[...], h2_ref[...], c2_ref[...])
    h1, c1, h2, c2 = jax.lax.fori_loop(0, Tc, step, init, unroll=True)

    # Carry state into the next chunk.
    h1_ref[...] = h1
    c1_ref[...] = c1
    h2_ref[...] = h2
    c2_ref[...] = c2
    # Resident output block (same block index every chunk): only the final value is
    # written back to HBM, as a lane-dense (B_pad, G2) tile. Padded lanes stay 0.
    hN_ref[...] = h2


# -----------------------------------------------------------------------------
# Parameters (PyTorch nn.LSTM shapes, gate order i,f,g,o, U(-1/sqrt(H), 1/sqrt(H)))
# -----------------------------------------------------------------------------
def init_params(key, n_features, embedding_dim):
    hidden = 2 * embedding_dim

    def lstm_params(k, input_size, hidden_size):
        bound = 1.0 / (hidden_size ** 0.5)
        ks = jax.random.split(k, 4)
        return dict(
            w_ih=jax.random.uniform(ks[0], (4 * hidden_size, input_size), jnp.float32, -bound, bound),
            w_hh=jax.random.uniform(ks[1], (4 * hidden_size, hidden_size), jnp.float32, -bound, bound),
            b_ih=jax.random.uniform(ks[2], (4 * hidden_size,), jnp.float32, -bound, bound),
            b_hh=jax.random.uniform(ks[3], (4 * hidden_size,), jnp.float32, -bound, bound),
        )

    k1, k2 = jax.random.split(key)
    return {"rnn1": lstm_params(k1, n_features, hidden),       # n_features -> 2*emb
            "rnn2": lstm_params(k2, hidden, embedding_dim)}    # 2*emb      -> emb


def _gate_pad_cols(m, H, G):
    """(K, 4H) gate-ordered matrix -> (K, 4G) with each gate block zero-padded to G lanes."""
    K = m.shape[0]
    out = jnp.zeros((K, 4 * G), jnp.float32)
    for k in range(4):
        out = out.at[:, k * G:k * G + H].set(m[:, k * H:(k + 1) * H])
    return out


def prepare_encoder_params(params, n_features, embedding_dim):
    """One-time padding/transposition/bf16-cast of the PyTorch-shaped weights."""
    H1 = 2 * embedding_dim
    H2 = embedding_dim
    G1 = _round_up(H1, 128)
    G2 = _round_up(H2, 128)
    # Tiny F uses the in-kernel VPU broadcast path -> pad only to 8; otherwise MXU GEMM.
    I_pad = _round_up(n_features, 8) if n_features <= 8 else _round_up(n_features, 128)
    p1, p2 = params["rnn1"], params["rnn2"]

    wih1_t = jnp.zeros((I_pad, 4 * H1), jnp.float32).at[:n_features, :].set(p1["w_ih"].T)
    whh1_t = jnp.zeros((G1, 4 * H1), jnp.float32).at[:H1, :].set(p1["w_hh"].T)
    b1 = (p1["b_ih"] + p1["b_hh"]).reshape(1, 4 * H1).astype(jnp.float32)

    wih2_t = jnp.zeros((G1, 4 * H2), jnp.float32).at[:H1, :].set(p2["w_ih"].T)
    whh2_t = jnp.zeros((G2, 4 * H2), jnp.float32).at[:H2, :].set(p2["w_hh"].T)
    b2 = (p2["b_ih"] + p2["b_hh"]).reshape(1, 4 * H2).astype(jnp.float32)

    return dict(
        wih1_t=_gate_pad_cols(wih1_t, H1, G1).astype(jnp.bfloat16),  # (I_pad, 4*G1)
        whh1_t=_gate_pad_cols(whh1_t, H1, G1).astype(jnp.bfloat16),  # (G1,    4*G1)
        b1=_gate_pad_cols(b1, H1, G1),                               # (1,     4*G1) f32
        wih2_t=_gate_pad_cols(wih2_t, H2, G2).astype(jnp.bfloat16),  # (G1,    4*G2)
        whh2_t=_gate_pad_cols(whh2_t, H2, G2).astype(jnp.bfloat16),  # (G2,    4*G2)
        b2=_gate_pad_cols(b2, H2, G2),                               # (1,     4*G2) f32
    )


# -----------------------------------------------------------------------------
# Forward pass: x (seq_len, batch, n_features) -> hidden_n (1, batch, embedding_dim)
# -----------------------------------------------------------------------------
@functools.partial(jax.jit, static_argnames=("embedding_dim", "t_chunk"))
def encoder_forward(x, padded, *, embedding_dim, t_chunk=8):
    T, B, F = x.shape
    B_pad = _round_up(B, 8)
    I_pad = padded["wih1_t"].shape[0]
    G1 = padded["whh1_t"].shape[0]
    G2 = padded["whh2_t"].shape[0]

    # Chunk length that divides T: bounds the per-chunk unrolled loop and lets Pallas
    # double-buffer the next chunk's x DMA under the current chunk's recurrence.
    tc = max(1, min(t_chunk, T))
    while T % tc:
        tc -= 1
    n_chunks = T // tc

    # Batch/lane zero-pad, bf16 cast for the MXU, flatten time into the sublane axis.
    x_p = jnp.zeros((T, B_pad, I_pad), jnp.bfloat16).at[:, :B, :F].set(
        x.astype(jnp.bfloat16))
    x_flat = x_p.reshape(T * B_pad, I_pad)

    # Scoped-VMEM budget: double-buffered x chunk + resident weights + scratch + out.
    bytes_x = 2 * tc * B_pad * I_pad * 2
    bytes_w = 2 * (((I_pad + G1) * 4 * G1 + (G1 + G2) * 4 * G2) * 2
                   + (4 * G1 + 4 * G2) * 4)
    bytes_scr = tc * B_pad * 4 * G1 * 4 + 2 * B_pad * (G1 + G2) * 4
    bytes_out = 2 * B_pad * G2 * 4
    vmem_bytes = int(min(bytes_x + bytes_w + bytes_scr + bytes_out + (8 << 20),
                         100 << 20))

    kernel = functools.partial(_encoder_kernel, n_feat=F)

    grid_spec = pltpu.PrefetchScalarGridSpec(
        num_scalar_prefetch=0,
        grid=(n_chunks,),
        in_specs=[
            pl.BlockSpec((tc * B_pad, I_pad), lambda c: (c, 0)),   # x, chunked over T
            pl.BlockSpec((I_pad, 4 * G1), lambda c: (0, 0)),       # wih1 (resident)
            pl.BlockSpec((1, 4 * G1), lambda c: (0, 0)),           # b1
            pl.BlockSpec((G1, 4 * G1), lambda c: (0, 0)),          # whh1
            pl.BlockSpec((G1, 4 * G2), lambda c: (0, 0)),          # wih2
            pl.BlockSpec((1, 4 * G2), lambda c: (0, 0)),           # b2
            pl.BlockSpec((G2, 4 * G2), lambda c: (0, 0)),          # whh2
        ],
        out_specs=pl.BlockSpec((B_pad, G2), lambda c: (0, 0)),     # resident final h
        scratch_shapes=[
            pltpu.VMEM((tc * B_pad, 4 * G1), jnp.float32),  # gx1: per-chunk input proj
            pltpu.VMEM((B_pad, G1), jnp.float32),           # h1 carried across chunks
            pltpu.VMEM((B_pad, G1), jnp.float32),           # c1
            pltpu.VMEM((B_pad, G2), jnp.float32),           # h2
            pltpu.VMEM((B_pad, G2), jnp.float32),           # c2
        ],
    )

    hN = pl.pallas_call(
        kernel,
        out_shape=jax.ShapeDtypeStruct((B_pad, G2), jnp.float32),
        grid_spec=grid_spec,
        compiler_params=pltpu.CompilerParams(
            dimension_semantics=("arbitrary",),
            vmem_limit_bytes=vmem_bytes),
    )(x_flat, padded["wih1_t"], padded["b1"], padded["whh1_t"],
      padded["wih2_t"], padded["b2"], padded["whh2_t"])

    # PyTorch hidden_n shape: (num_layers=1, batch, embedding_dim)
    return hN[:B, :embedding_dim][None]


# -----------------------------------------------------------------------------
# Pure-JAX reference (PyTorch LSTM semantics, f32) for correctness check
# -----------------------------------------------------------------------------
def _lstm_ref(x, w_ih, w_hh, b_ih, b_hh):
    H = w_ih.shape[0] // 4
    B = x.shape[1]

    def step(carry, x_t):
        h, c = carry
        gates = x_t @ w_ih.T + h @ w_hh.T + b_ih + b_hh
        i, f, g, o = jnp.split(gates, 4, axis=-1)
        c = jax.nn.sigmoid(f) * c + jax.nn.sigmoid(i) * jnp.tanh(g)
        h = jax.nn.sigmoid(o) * jnp.tanh(c)
        return (h, c), h

    init = (jnp.zeros((B, H), jnp.float32), jnp.zeros((B, H), jnp.float32))
    (h_n, _), hs = jax.lax.scan(step, init, x)
    return hs, h_n


def reference_encoder(x, params):
    h1, _ = _lstm_ref(x, **params["rnn1"])
    _, h2_n = _lstm_ref(h1, **params["rnn2"])
    return h2_n[None]


if __name__ == "__main__":
    seq_len, batch, n_features, embedding_dim = 8, 2, 1, 64

    key = jax.random.PRNGKey(0)
    k_x, k_p = jax.random.split(key)
    x = jax.random.normal(k_x, (seq_len, batch, n_features), jnp.float32)
    params = init_params(k_p, n_features, embedding_dim)
    padded = prepare_encoder_params(params, n_features, embedding_dim)

    # t_chunk=4 -> 2 grid steps: exercises the chunked-T pipeline and state carry.
    hidden_n = encoder_forward(x, padded, embedding_dim=embedding_dim, t_chunk=4)
    hidden_n = jax.block_until_ready(hidden_n)
    assert hidden_n.shape == (1, batch, embedding_dim)

    h_ref = reference_encoder(x, params)
    max_err = float(jnp.max(jnp.abs(hidden_n - h_ref)))
    # bf16 MXU operands -> tolerance loosened vs the f32-everywhere version.
    assert jnp.allclose(hidden_n, h_ref, atol=5e-2, rtol=5e-2), f"max_err={max_err}"

    print("KERNEL_OK")
</pallas_src>

<mosaic_0001>
module attributes {stable_mosaic.version = 11 : i64} {
  func.func @_encoder_kernel(%arg0: i32, %arg1: memref<32x8xbf16, #tpu.memory_space<vmem>>, %arg2: memref<8x512xbf16, #tpu.memory_space<vmem>>, %arg3: memref<1x512xf32, #tpu.memory_space<vmem>>, %arg4: memref<128x512xbf16, #tpu.memory_space<vmem>>, %arg5: memref<128x512xbf16, #tpu.memory_space<vmem>>, %arg6: memref<1x512xf32, #tpu.memory_space<vmem>>, %arg7: memref<128x512xbf16, #tpu.memory_space<vmem>>, %arg8: memref<8x128xf32, #tpu.memory_space<vmem>>, %arg9: memref<32x512xf32, #tpu.memory_space<vmem>>, %arg10: memref<8x128xf32, #tpu.memory_space<vmem>>, %arg11: memref<8x128xf32, #tpu.memory_space<vmem>>, %arg12: memref<8x128xf32, #tpu.memory_space<vmem>>, %arg13: memref<8x128xf32, #tpu.memory_space<vmem>>) attributes {dimension_semantics = [#tpu.dimension_semantics<arbitrary>], iteration_bounds = array<i64: 2>, scalar_prefetch = 0 : i64, scratch_operands = 5 : i64, tpu.core_type = #tpu.core_type<tc>, window_params = [{transform_indices = @transform_0, window_bounds = array<i64: 32, 8>}, {pipeline_mode = #tpu.pipeline_mode<synchronous>, transform_indices = @transform_1, window_bounds = array<i64: 8, 512>}, {pipeline_mode = #tpu.pipeline_mode<synchronous>, transform_indices = @transform_2, window_bounds = array<i64: 1, 512>}, {pipeline_mode = #tpu.pipeline_mode<synchronous>, transform_indices = @transform_3, window_bounds = array<i64: 128, 512>}, {pipeline_mode = #tpu.pipeline_mode<synchronous>, transform_indices = @transform_4, window_bounds = array<i64: 128, 512>}, {pipeline_mode = #tpu.pipeline_mode<synchronous>, transform_indices = @transform_5, window_bounds = array<i64: 1, 512>}, {pipeline_mode = #tpu.pipeline_mode<synchronous>, transform_indices = @transform_6, window_bounds = array<i64: 128, 512>}, {pipeline_mode = #tpu.pipeline_mode<synchronous>, transform_indices = @transform_7, window_bounds = array<i64: 8, 128>}]} {
    %c0_i32 = arith.constant 0 : i32
    %0 = arith.cmpi eq, %arg0, %c0_i32 : i32
    %1 = arith.extui %0 : i1 to i32
    %c0_i32_0 = arith.constant 0 : i32
    %2 = arith.cmpi ne, %1, %c0_i32_0 : i32
    scf.if %2 {
      %cst_150 = arith.constant 0.000000e+00 : f32
      %346 = vector.broadcast %cst_150 : f32 to vector<8x128xf32>
      %c0_151 = arith.constant 0 : index
      %c0_152 = arith.constant 0 : index
      %347 = vector.load %arg10[%c0_151, %c0_152] : memref<8x128xf32, #tpu.memory_space<vmem>>, vector<8x128xf32>
      tpu.vector_store %arg10[%c0_151, %c0_152], %346 {strides = array<i32>} : memref<8x128xf32, #tpu.memory_space<vmem>>, vector<8x128xf32>,
      %cst_153 = arith.constant 0.000000e+00 : f32
      %348 = vector.broadcast %cst_153 : f32 to vector<8x128xf32>
      %c0_154 = arith.constant 0 : index
      %c0_155 = arith.constant 0 : index
      %349 = vector.load %arg11[%c0_154, %c0_155] : memref<8x128xf32, #tpu.memory_space<vmem>>, vector<8x128xf32>
      tpu.vector_store %arg11[%c0_154, %c0_155], %348 {strides = array<i32>} : memref<8x128xf32, #tpu.memory_space<vmem>>, vector<8x128xf32>,
      %cst_156 = arith.constant 0.000000e+00 : f32
      %350 = vector.broadcast %cst_156 : f32 to vector<8x128xf32>
      %c0_157 = arith.constant 0 : index
      %c0_158 = arith.constant 0 : index
      %351 = vector.load %arg12[%c0_157, %c0_158] : memref<8x128xf32, #tpu.memory_space<vmem>>, vector<8x128xf32>
      tpu.vector_store %arg12[%c0_157, %c0_158], %350 {strides = array<i32>} : memref<8x128xf32, #tpu.memory_space<vmem>>, vector<8x128xf32>,
      %cst_159 = arith.constant 0.000000e+00 : f32
      %352 = vector.broadcast %cst_159 : f32 to vector<8x128xf32>
      %c0_160 = arith.constant 0 : index
      %c0_161 = arith.constant 0 : index
      %353 = vector.load %arg13[%c0_160, %c0_161] : memref<8x128xf32, #tpu.memory_space<vmem>>, vector<8x128xf32>
      tpu.vector_store %arg13[%c0_160, %c0_161], %352 {strides = array<i32>} : memref<8x128xf32, #tpu.memory_space<vmem>>, vector<8x128xf32>,
    } else {
    }
    %c0 = arith.constant 0 : index
    %c0_1 = arith.constant 0 : index
    %3 = vector.load %arg1[%c0, %c0_1] : memref<32x8xbf16, #tpu.memory_space<vmem>>, vector<32x8xbf16>
    %4 = arith.extf %3 : vector<32x8xbf16> to vector<32x8xf32>
    %cst = arith.constant 0.000000e+00 : f32
    %5 = vector.broadcast %cst : f32 to vector<32x512xf32>
    %6 = vector.extract_strided_slice %4 {offsets = [0, 0], sizes = [32, 1], strides = [1, 1]} : vector<32x8xf32> to vector<32x1xf32>
    %c0_2 = arith.constant 0 : index
    %c0_3 = arith.constant 0 : index
    %7 = vector.load %arg2[%c0_2, %c0_3] : memref<8x512xbf16, #tpu.memory_space<vmem>>, vector<1x512xbf16>
    %8 = arith.extf %7 : vector<1x512xbf16> to vector<1x512xf32>
    %9 = vector.broadcast %6 : vector<32x1xf32> to vector<32x512xf32>
    %10 = vector.broadcast %8 : vector<1x512xf32> to vector<32x512xf32>
    %11 = arith.mulf %9, %10 : vector<32x512xf32>
    %12 = arith.addf %5, %11 : vector<32x512xf32>
    %c0_4 = arith.constant 0 : index
    %c0_5 = arith.constant 0 : index
    %13 = vector.load %arg3[%c0_4, %c0_5] : memref<1x512xf32, #tpu.memory_space<vmem>>, vector<1x512xf32>
    %14 = vector.broadcast %13 : vector<1x512xf32> to vector<32x512xf32>
    %15 = arith.addf %12, %14 : vector<32x512xf32>
    %c0_6 = arith.constant 0 : index
    %c0_7 = arith.constant 0 : index
    %16 = vector.load %arg9[%c0_6, %c0_7] : memref<32x512xf32, #tpu.memory_space<vmem>>, vector<32x512xf32>
    tpu.vector_store %arg9[%c0_6, %c0_7], %15 {strides = array<i32>} : memref<32x512xf32, #tpu.memory_space<vmem>>, vector<32x512xf32>,
    %c0_8 = arith.constant 0 : index
    %c0_9 = arith.constant 0 : index
    %17 = vector.load %arg10[%c0_8, %c0_9] : memref<8x128xf32, #tpu.memory_space<vmem>>, vector<8x128xf32>
    %c0_10 = arith.constant 0 : index
    %c0_11 = arith.constant 0 : index
    %18 = vector.load %arg11[%c0_10, %c0_11] : memref<8x128xf32, #tpu.memory_space<vmem>>, vector<8x128xf32>
    %c0_12 = arith.constant 0 : index
    %c0_13 = arith.constant 0 : index
    %19 = vector.load %arg12[%c0_12, %c0_13] : memref<8x128xf32, #tpu.memory_space<vmem>>, vector<8x128xf32>
    %c0_14 = arith.constant 0 : index
    %c0_15 = arith.constant 0 : index
    %20 = vector.load %arg13[%c0_14, %c0_15] : memref<8x128xf32, #tpu.memory_space<vmem>>, vector<8x128xf32>
    %c0_i32_16 = arith.constant 0 : i32
    %c8_i32 = arith.constant 8 : i32
    %21 = arith.muli %c0_i32_16, %c8_i32 : i32
    %22 = tpu.assume_multiple %21, 8 : i32
    %23 = arith.index_cast %22 : i32 to index
    %c0_17 = arith.constant 0 : index
    %24 = vector.load %arg9[%23, %c0_17] : memref<32x512xf32, #tpu.memory_space<vmem>>, vector<8x512xf32>
    %25 = arith.truncf %17 : vector<8x128xf32> to vector<8x128xbf16>
    %c0_18 = arith.constant 0 : index
    %c0_19 = arith.constant 0 : index
    %26 = vector.load %arg4[%c0_18, %c0_19] : memref<128x512xbf16, #tpu.memory_space<vmem>>, vector<128x512xbf16>
    %cst_20 = arith.constant dense<0.000000e+00> : vector<8x512xf32>
    %27 = tpu.matmul %25, %26, %cst_20 {dimension_numbers = #tpu.dot_dimension_numbers<[1], [0], [0], [1], [0, 0, 1, 1], [], []>} : vector<8x128xbf16>, vector<128x512xbf16>, vector<8x512xf32> -> vector<8x512xf32>
    %28 = arith.addf %24, %27 : vector<8x512xf32>
    %29 = vector.extract_strided_slice %28 {offsets = [0, 0], sizes = [8, 128], strides = [1, 1]} : vector<8x512xf32> to vector<8x128xf32>
    %cst_21 = arith.constant 5.000000e-01 : f32
    %30 = vector.broadcast %cst_21 : f32 to vector<8x128xf32>
    %31 = arith.mulf %30, %29 : vector<8x128xf32>
    %32 = math.tanh %31 : vector<8x128xf32>
    %cst_22 = arith.constant 5.000000e-01 : f32
    %33 = vector.broadcast %cst_22 : f32 to vector<8x128xf32>
    %34 = arith.mulf %33, %32 : vector<8x128xf32>
    %cst_23 = arith.constant 5.000000e-01 : f32
    %35 = vector.broadcast %cst_23 : f32 to vector<8x128xf32>
    %36 = arith.addf %34, %35 : vector<8x128xf32>
    %37 = vector.extract_strided_slice %28 {offsets = [0, 128], sizes = [8, 128], strides = [1, 1]} : vector<8x512xf32> to vector<8x128xf32>
    %cst_24 = arith.constant 5.000000e-01 : f32
    %38 = vector.broadcast %cst_24 : f32 to vector<8x128xf32>
    %39 = arith.mulf %38, %37 : vector<8x128xf32>
    %40 = math.tanh %39 : vector<8x128xf32>
    %cst_25 = arith.constant 5.000000e-01 : f32
    %41 = vector.broadcast %cst_25 : f32 to vector<8x128xf32>
    %42 = arith.mulf %41, %40 : vector<8x128xf32>
    %cst_26 = arith.constant 5.000000e-01 : f32
    %43 = vector.broadcast %cst_26 : f32 to vector<8x128xf32>
    %44 = arith.addf %42, %43 : vector<8x128xf32>
    %45 = vector.extract_strided_slice %28 {offsets = [0, 256], sizes = [8, 128], strides = [1, 1]} : vector<8x512xf32> to vector<8x128xf32>
    %46 = math.tanh %45 : vector<8x128xf32>
    %47 = vector.extract_strided_slice %28 {offsets = [0, 384], sizes = [8, 128], strides = [1, 1]} : vector<8x512xf32> to vector<8x128xf32>
    %cst_27 = arith.constant 5.000000e-01 : f32
    %48 = vector.broadcast %cst_27 : f32 to vector<8x128xf32>
    %49 = arith.mulf %48, %47 : vector<8x128xf32>
    %50 = math.tanh %49 : vector<8x128xf32>
    %cst_28 = arith.constant 5.000000e-01 : f32
    %51 = vector.broadcast %cst_28 : f32 to vector<8x128xf32>
    %52 = arith.mulf %51, %50 : vector<8x128xf32>
    %cst_29 = arith.constant 5.000000e-01 : f32
    %53 = vector.broadcast %cst_29 : f32 to vector<8x128xf32>
    %54 = arith.addf %52, %53 : vector<8x128xf32>
    %55 = arith.mulf %44, %18 : vector<8x128xf32>
    %56 = arith.mulf %36, %46 : vector<8x128xf32>
    %57 = arith.addf %55, %56 : vector<8x128xf32>
    %58 = math.tanh %57 : vector<8x128xf32>
    %59 = arith.mulf %54, %58 : vector<8x128xf32>
    %60 = arith.truncf %59 : vector<8x128xf32> to vector<8x128xbf16>
    %c0_30 = arith.constant 0 : index
    %c0_31 = arith.constant 0 : index
    %61 = vector.load %arg5[%c0_30, %c0_31] : memref<128x512xbf16, #tpu.memory_space<vmem>>, vector<128x512xbf16>
    %cst_32 = arith.constant dense<0.000000e+00> : vector<8x512xf32>
    %62 = tpu.matmul %60, %61, %cst_32 {dimension_numbers = #tpu.dot_dimension_numbers<[1], [0], [0], [1], [0, 0, 1, 1], [], []>} : vector<8x128xbf16>, vector<128x512xbf16>, vector<8x512xf32> -> vector<8x512xf32>
    %c0_33 = arith.constant 0 : index
    %c0_34 = arith.constant 0 : index
    %63 = vector.load %arg6[%c0_33, %c0_34] : memref<1x512xf32, #tpu.memory_space<vmem>>, vector<1x512xf32>
    %64 = vector.broadcast %63 : vector<1x512xf32> to vector<8x512xf32>
    %65 = arith.addf %62, %64 : vector<8x512xf32>
    %66 = arith.truncf %19 : vector<8x128xf32> to vector<8x128xbf16>
    %c0_35 = arith.constant 0 : index
    %c0_36 = arith.constant 0 : index
    %67 = vector.load %arg7[%c0_35, %c0_36] : memref<128x512xbf16, #tpu.memory_space<vmem>>, vector<128x512xbf16>
    %cst_37 = arith.constant dense<0.000000e+00> : vector<8x512xf32>
    %68 = tpu.matmul %66, %67, %cst_37 {dimension_numbers = #tpu.dot_dimension_numbers<[1], [0], [0], [1], [0, 0, 1, 1], [], []>} : vector<8x128xbf16>, vector<128x512xbf16>, vector<8x512xf32> -> vector<8x512xf32>
    %69 = arith.addf %65, %68 : vector<8x512xf32>
    %70 = vector.extract_strided_slice %69 {offsets = [0, 0], sizes = [8, 128], strides = [1, 1]} : vector<8x512xf32> to vector<8x128xf32>
    %cst_38 = arith.constant 5.000000e-01 : f32
    %71 = vector.broadcast %cst_38 : f32 to vector<8x128xf32>
    %72 = arith.mulf %71, %70 : vector<8x128xf32>
    %73 = math.tanh %72 : vector<8x128xf32>
    %cst_39 = arith.constant 5.000000e-01 : f32
    %74 = vector.broadcast %cst_39 : f32 to vector<8x128xf32>
    %75 = arith.mulf %74, %73 : vector<8x128xf32>
    %cst_40 = arith.constant 5.000000e-01 : f32
    %76 = vector.broadcast %cst_40 : f32 to vector<8x128xf32>
    %77 = arith.addf %75, %76 : vector<8x128xf32>
    %78 = vector.extract_strided_slice %69 {offsets = [0, 128], sizes = [8, 128], strides = [1, 1]} : vector<8x512xf32> to vector<8x128xf32>
    %cst_41 = arith.constant 5.000000e-01 : f32
    %79 = vector.broadcast %cst_41 : f32 to vector<8x128xf32>
    %80 = arith.mulf %79, %78 : vector<8x128xf32>
    %81 = math.tanh %80 : vector<8x128xf32>
    %cst_42 = arith.constant 5.000000e-01 : f32
    %82 = vector.broadcast %cst_42 : f32 to vector<8x128xf32>
    %83 = arith.mulf %82, %81 : vector<8x128xf32>
    %cst_43 = arith.constant 5.000000e-01 : f32
    %84 = vector.broadcast %cst_43 : f32 to vector<8x128xf32>
    %85 = arith.addf %83, %84 : vector<8x128xf32>
    %86 = vector.extract_strided_slice %69 {offsets = [0, 256], sizes = [8, 128], strides = [1, 1]} : vector<8x512xf32> to vector<8x128xf32>
    %87 = math.tanh %86 : vector<8x128xf32>
    %88 = vector.extract_strided_slice %69 {offsets = [0, 384], sizes = [8, 128], strides = [1, 1]} : vector<8x512xf32> to vector<8x128xf32>
    %cst_44 = arith.constant 5.000000e-01 : f32
    %89 = vector.broadcast %cst_44 : f32 to vector<8x128xf32>
    %90 = arith.mulf %89, %88 : vector<8x128xf32>
    %91 = math.tanh %90 : vector<8x128xf32>
    %cst_45 = arith.constant 5.000000e-01 : f32
    %92 = vector.broadcast %cst_45 : f32 to vector<8x128xf32>
    %93 = arith.mulf %92, %91 : vector<8x128xf32>
    %cst_46 = arith.constant 5.000000e-01 : f32
    %94 = vector.broadcast %cst_46 : f32 to vector<8x128xf32>
    %95 = arith.addf %93, %94 : vector<8x128xf32>
    %96 = arith.mulf %85, %20 : vector<8x128xf32>
    %97 = arith.mulf %77, %87 : vector<8x128xf32>
    %98 = arith.addf %96, %97 : vector<8x128xf32>
    %99 = math.tanh %98 : vector<8x128xf32>
    %100 = arith.mulf %95, %99 : vector<8x128xf32>
    %c1_i32 = arith.constant 1 : i32
    %c8_i32_47 = arith.constant 8 : i32
    %101 = arith.muli %c1_i32, %c8_i32_47 : i32
    %102 = tpu.assume_multiple %101, 8 : i32
    %103 = arith.index_cast %102 : i32 to index
    %c0_48 = arith.constant 0 : index
    %104 = vector.load %arg9[%103, %c0_48] : memref<32x512xf32, #tpu.memory_space<vmem>>, vector<8x512xf32>
    %105 = arith.truncf %59 : vector<8x128xf32> to vector<8x128xbf16>
    %c0_49 = arith.constant 0 : index
    %c0_50 = arith.constant 0 : index
    %106 = vector.load %arg4[%c0_49, %c0_50] : memref<128x512xbf16, #tpu.memory_space<vmem>>, vector<128x512xbf16>
    %cst_51 = arith.constant dense<0.000000e+00> : vector<8x512xf32>
    %107 = tpu.matmul %105, %106, %cst_51 {dimension_numbers = #tpu.dot_dimension_numbers<[1], [0], [0], [1], [0, 0, 1, 1], [], []>} : vector<8x128xbf16>, vector<128x512xbf16>, vector<8x512xf32> -> vector<8x512xf32>
    %108 = arith.addf %104, %107 : vector<8x512xf32>
    %109 = vector.extract_strided_slice %108 {offsets = [0, 0], sizes = [8, 128], strides = [1, 1]} : vector<8x512xf32> to vector<8x128xf32>
    %cst_52 = arith.constant 5.000000e-01 : f32
    %110 = vector.broadcast %cst_52 : f32 to vector<8x128xf32>
    %111 = arith.mulf %110, %109 : vector<8x128xf32>
    %112 = math.tanh %111 : vector<8x128xf32>
    %cst_53 = arith.constant 5.000000e-01 : f32
    %113 = vector.broadcast %cst_53 : f32 to vector<8x128xf32>
    %114 = arith.mulf %113, %112 : vector<8x128xf32>
    %cst_54 = arith.constant 5.000000e-01 : f32
    %115 = vector.broadcast %cst_54 : f32 to vector<8x128xf32>
    %116 = arith.addf %114, %115 : vector<8x128xf32>
    %117 = vector.extract_strided_slice %108 {offsets = [0, 128], sizes = [8, 128], strides = [1, 1]} : vector<8x512xf32> to vector<8x128xf32>
    %cst_55 = arith.constant 5.000000e-01 : f32
    %118 = vector.broadcast %cst_55 : f32 to vector<8x128xf32>
    %119 = arith.mulf %118, %117 : vector<8x128xf32>
    %120 = math.tanh %119 : vector<8x128xf32>
    %cst_56 = arith.constant 5.000000e-01 : f32
    %121 = vector.broadcast %cst_56 : f32 to vector<8x128xf32>
    %122 = arith.mulf %121, %120 : vector<8x128xf32>
    %cst_57 = arith.constant 5.000000e-01 : f32
    %123 = vector.broadcast %cst_57 : f32 to vector<8x128xf32>
    %124 = arith.addf %122, %123 : vector<8x128xf32>
    %125 = vector.extract_strided_slice %108 {offsets = [0, 256], sizes = [8, 128], strides = [1, 1]} : vector<8x512xf32> to vector<8x128xf32>
    %126 = math.tanh %125 : vector<8x128xf32>
    %127 = vector.extract_strided_slice %108 {offsets = [0, 384], sizes = [8, 128], strides = [1, 1]} : vector<8x512xf32> to vector<8x128xf32>
    %cst_58 = arith.constant 5.000000e-01 : f32
    %128 = vector.broadcast %cst_58 : f32 to vector<8x128xf32>
    %129 = arith.mulf %128, %127 : vector<8x128xf32>
    %130 = math.tanh %129 : vector<8x128xf32>
    %cst_59 = arith.constant 5.000000e-01 : f32
    %131 = vector.broadcast %cst_59 : f32 to vector<8x128xf32>
    %132 = arith.mulf %131, %130 : vector<8x128xf32>
    %cst_60 = arith.constant 5.000000e-01 : f32
    %133 = vector.broadcast %cst_60 : f32 to vector<8x128xf32>
    %134 = arith.addf %132, %133 : vector<8x128xf32>
    %135 = arith.mulf %124, %57 : vector<8x128xf32>
    %136 = arith.mulf %116, %126 : vector<8x128xf32>
    %137 = arith.addf %135, %136 : vector<8x128xf32>
    %138 = math.tanh %137 : vector<8x128xf32>
    %139 = arith.mulf %134, %138 : vector<8x128xf32>
    %140 = arith.truncf %139 : vector<8x128xf32> to vector<8x128xbf16>
    %c0_61 = arith.constant 0 : index
    %c0_62 = arith.constant 0 : index
    %141 = vector.load %arg5[%c0_61, %c0_62] : memref<128x512xbf16, #tpu.memory_space<vmem>>, vector<128x512xbf16>
    %cst_63 = arith.constant dense<0.000000e+00> : vector<8x512xf32>
    %142 = tpu.matmul %140, %141, %cst_63 {dimension_numbers = #tpu.dot_dimension_numbers<[1], [0], [0], [1], [0, 0, 1, 1], [], []>} : vector<8x128xbf16>, vector<128x512xbf16>, vector<8x512xf32> -> vector<8x512xf32>
    %c0_64 = arith.constant 0 : index
    %c0_65 = arith.constant 0 : index
    %143 = vector.load %arg6[%c0_64, %c0_65] : memref<1x512xf32, #tpu.memory_space<vmem>>, vector<1x512xf32>
    %144 = vector.broadcast %143 : vector<1x512xf32> to vector<8x512xf32>
    %145 = arith.addf %142, %144 : vector<8x512xf32>
    %146 = arith.truncf %100 : vector<8x128xf32> to vector<8x128xbf16>
    %c0_66 = arith.constant 0 : index
    %c0_67 = arith.constant 0 : index
    %147 = vector.load %arg7[%c0_66, %c0_67] : memref<128x512xbf16, #tpu.memory_space<vmem>>, vector<128x512xbf16>
    %cst_68 = arith.constant dense<0.000000e+00> : vector<8x512xf32>
    %148 = tpu.matmul %146, %147, %cst_68 {dimension_numbers = #tpu.dot_dimension_numbers<[1], [0], [0], [1], [0, 0, 1, 1], [], []>} : vector<8x128xbf16>, vector<128x512xbf16>, vector<8x512xf32> -> vector<8x512xf32>
    %149 = arith.addf %145, %148 : vector<8x512xf32>
    %150 = vector.extract_strided_slice %149 {offsets = [0, 0], sizes = [8, 128], strides = [1, 1]} : vector<8x512xf32> to vector<8x128xf32>
    %cst_69 = arith.constant 5.000000e-01 : f32
    %151 = vector.broadcast %cst_69 : f32 to vector<8x128xf32>
    %152 = arith.mulf %151, %150 : vector<8x128xf32>
    %153 = math.tanh %152 : vector<8x128xf32>
    %cst_70 = arith.constant 5.000000e-01 : f32
    %154 = vector.broadcast %cst_70 : f32 to vector<8x128xf32>
    %155 = arith.mulf %154, %153 : vector<8x128xf32>
    %cst_71 = arith.constant 5.000000e-01 : f32
    %156 = vector.broadcast %cst_71 : f32 to vector<8x128xf32>
    %157 = arith.addf %155, %156 : vector<8x128xf32>
    %158 = vector.extract_strided_slice %149 {offsets = [0, 128], sizes = [8, 128], strides = [1, 1]} : vector<8x512xf32> to vector<8x128xf32>
    %cst_72 = arith.constant 5.000000e-01 : f32
    %159 = vector.broadcast %cst_72 : f32 to vector<8x128xf32>
    %160 = arith.mulf %159, %158 : vector<8x128xf32>
    %161 = math.tanh %160 : vector<8x128xf32>
    %cst_73 = arith.constant 5.000000e-01 : f32
    %162 = vector.broadcast %cst_73 : f32 to vector<8x128xf32>
    %163 = arith.mulf %162, %161 : vector<8x128xf32>
    %cst_74 = arith.constant 5.000000e-01 : f32
    %164 = vector.broadcast %cst_74 : f32 to vector<8x128xf32>
    %165 = arith.addf %163, %164 : vector<8x128xf32>
    %166 = vector.extract_strided_slice %149 {offsets = [0, 256], sizes = [8, 128], strides = [1, 1]} : vector<8x512xf32> to vector<8x128xf32>
    %167 = math.tanh %166 : vector<8x128xf32>
    %168 = vector.extract_strided_slice %149 {offsets = [0, 384], sizes = [8, 128], strides = [1, 1]} : vector<8x512xf32> to vector<8x128xf32>
    %cst_75 = arith.constant 5.000000e-01 : f32
    %169 = vector.broadcast %cst_75 : f32 to vector<8x128xf32>
    %170 = arith.mulf %169, %168 : vector<8x128xf32>
    %171 = math.tanh %170 : vector<8x128xf32>
    %cst_76 = arith.constant 5.000000e-01 : f32
    %172 = vector.broadcast %cst_76 : f32 to vector<8x128xf32>
    %173 = arith.mulf %172, %171 : vector<8x128xf32>
    %cst_77 = arith.constant 5.000000e-01 : f32
    %174 = vector.broadcast %cst_77 : f32 to vector<8x128xf32>
    %175 = arith.addf %173, %174 : vector<8x128xf32>
    %176 = arith.mulf %165, %98 : vector<8x128xf32>
    %177 = arith.mulf %157, %167 : vector<8x128xf32>
    %178 = arith.addf %176, %177 : vector<8x128xf32>
    %179 = math.tanh %178 : vector<8x128xf32>
    %180 = arith.mulf %175, %179 : vector<8x128xf32>
    %c2_i32 = arith.constant 2 : i32
    %c8_i32_78 = arith.constant 8 : i32
    %181 = arith.muli %c2_i32, %c8_i32_78 : i32
    %182 = tpu.assume_multiple %181, 8 : i32
    %183 = arith.index_cast %182 : i32 to index
    %c0_79 = arith.constant 0 : index
    %184 = vector.load %arg9[%183, %c0_79] : memref<32x512xf32, #tpu.memory_space<vmem>>, vector<8x512xf32>
    %185 = arith.truncf %139 : vector<8x128xf32> to vector<8x128xbf16>
    %c0_80 = arith.constant 0 : index
    %c0_81 = arith.constant 0 : index
    %186 = vector.load %arg4[%c0_80, %c0_81] : memref<128x512xbf16, #tpu.memory_space<vmem>>, vector<128x512xbf16>
    %cst_82 = arith.constant dense<0.000000e+00> : vector<8x512xf32>
    %187 = tpu.matmul %185, %186, %cst_82 {dimension_numbers = #tpu.dot_dimension_numbers<[1], [0], [0], [1], [0, 0, 1, 1], [], []>} : vector<8x128xbf16>, vector<128x512xbf16>, vector<8x512xf32> -> vector<8x512xf32>
    %188 = arith.addf %184, %187 : vector<8x512xf32>
    %189 = vector.extract_strided_slice %188 {offsets = [0, 0], sizes = [8, 128], strides = [1, 1]} : vector<8x512xf32> to vector<8x128xf32>
    %cst_83 = arith.constant 5.000000e-01 : f32
    %190 = vector.broadcast %cst_83 : f32 to vector<8x128xf32>
    %191 = arith.mulf %190, %189 : vector<8x128xf32>
    %192 = math.tanh %191 : vector<8x128xf32>
    %cst_84 = arith.constant 5.000000e-01 : f32
    %193 = vector.broadcast %cst_84 : f32 to vector<8x128xf32>
    %194 = arith.mulf %193, %192 : vector<8x128xf32>
    %cst_85 = arith.constant 5.000000e-01 : f32
    %195 = vector.broadcast %cst_85 : f32 to vector<8x128xf32>
    %196 = arith.addf %194, %195 : vector<8x128xf32>
    %197 = vector.extract_strided_slice %188 {offsets = [0, 128], sizes = [8, 128], strides = [1, 1]} : vector<8x512xf32> to vector<8x128xf32>
    %cst_86 = arith.constant 5.000000e-01 : f32
    %198 = vector.broadcast %cst_86 : f32 to vector<8x128xf32>
    %199 = arith.mulf %198, %197 : vector<8x128xf32>
    %200 = math.tanh %199 : vector<8x128xf32>
    %cst_87 = arith.constant 5.000000e-01 : f32
    %201 = vector.broadcast %cst_87 : f32 to vector<8x128xf32>
    %202 = arith.mulf %201, %200 : vector<8x128xf32>
    %cst_88 = arith.constant 5.000000e-01 : f32
    %203 = vector.broadcast %cst_88 : f32 to vector<8x128xf32>
    %204 = arith.addf %202, %203 : vector<8x128xf32>
    %205 = vector.extract_strided_slice %188 {offsets = [0, 256], sizes = [8, 128], strides = [1, 1]} : vector<8x512xf32> to vector<8x128xf32>
    %206 = math.tanh %205 : vector<8x128xf32>
    %207 = vector.extract_strided_slice %188 {offsets = [0, 384], sizes = [8, 128], strides = [1, 1]} : vector<8x512xf32> to vector<8x128xf32>
    %cst_89 = arith.constant 5.000000e-01 : f32
    %208 = vector.broadcast %cst_89 : f32 to vector<8x128xf32>
    %209 = arith.mulf %208, %207 : vector<8x128xf32>
    %210 = math.tanh %209 : vector<8x128xf32>
    %cst_90 = arith.constant 5.000000e-01 : f32
    %211 = vector.broadcast %cst_90 : f32 to vector<8x128xf32>
    %212 = arith.mulf %211, %210 : vector<8x128xf32>
    %cst_91 = arith.constant 5.000000e-01 : f32
    %213 = vector.broadcast %cst_91 : f32 to vector<8x128xf32>
    %214 = arith.addf %212, %213 : vector<8x128xf32>
    %215 = arith.mulf %204, %137 : vector<8x128xf32>
    %216 = arith.mulf %196, %206 : vector<8x128xf32>
    %217 = arith.addf %215, %216 : vector<8x128xf32>
    %218 = math.tanh %217 : vector<8x128xf32>
    %219 = arith.mulf %214, %218 : vector<8x128xf32>
    %220 = arith.truncf %219 : vector<8x128xf32> to vector<8x128xbf16>
    %c0_92 = arith.constant 0 : index
    %c0_93 = arith.constant 0 : index
    %221 = vector.load %arg5[%c0_92, %c0_93] : memref<128x512xbf16, #tpu.memory_space<vmem>>, vector<128x512xbf16>
    %cst_94 = arith.constant dense<0.000000e+00> : vector<8x512xf32>
    %222 = tpu.matmul %220, %221, %cst_94 {dimension_numbers = #tpu.dot_dimension_numbers<[1], [0], [0], [1], [0, 0, 1, 1], [], []>} : vector<8x128xbf16>, vector<128x512xbf16>, vector<8x512xf32> -> vector<8x512xf32>
    %c0_95 = arith.constant 0 : index
    %c0_96 = arith.constant 0 : index
    %223 = vector.load %arg6[%c0_95, %c0_96] : memref<1x512xf32, #tpu.memory_space<vmem>>, vector<1x512xf32>
    %224 = vector.broadcast %223 : vector<1x512xf32> to vector<8x512xf32>
    %225 = arith.addf %222, %224 : vector<8x512xf32>
    %226 = arith.truncf %180 : vector<8x128xf32> to vector<8x128xbf16>
    %c0_97 = arith.constant 0 : index
    %c0_98 = arith.constant 0 : index
    %227 = vector.load %arg7[%c0_97, %c0_98] : memref<128x512xbf16, #tpu.memory_space<vmem>>, vector<128x512xbf16>
    %cst_99 = arith.constant dense<0.000000e+00> : vector<8x512xf32>
    %228 = tpu.matmul %226, %227, %cst_99 {dimension_numbers = #tpu.dot_dimension_numbers<[1], [0], [0], [1], [0, 0, 1, 1], [], []>} : vector<8x128xbf16>, vector<128x512xbf16>, vector<8x512xf32> -> vector<8x512xf32>
    %229 = arith.addf %225, %228 : vector<8x512xf32>
    %230 = vector.extract_strided_slice %229 {offsets = [0, 0], sizes = [8, 128], strides = [1, 1]} : vector<8x512xf32> to vector<8x128xf32>
    %cst_100 = arith.constant 5.000000e-01 : f32
    %231 = vector.broadcast %cst_100 : f32 to vector<8x128xf32>
    %232 = arith.mulf %231, %230 : vector<8x128xf32>
    %233 = math.tanh %232 : vector<8x128xf32>
    %cst_101 = arith.constant 5.000000e-01 : f32
    %234 = vector.broadcast %cst_101 : f32 to vector<8x128xf32>
    %235 = arith.mulf %234, %233 : vector<8x128xf32>
    %cst_102 = arith.constant 5.000000e-01 : f32
    %236 = vector.broadcast %cst_102 : f32 to vector<8x128xf32>
    %237 = arith.addf %235, %236 : vector<8x128xf32>
    %238 = vector.extract_strided_slice %229 {offsets = [0, 128], sizes = [8, 128], strides = [1, 1]} : vector<8x512xf32> to vector<8x128xf32>
    %cst_103 = arith.constant 5.000000e-01 : f32
    %239 = vector.broadcast %cst_103 : f32 to vector<8x128xf32>
    %240 = arith.mulf %239, %238 : vector<8x128xf32>
    %241 = math.tanh %240 : vector<8x128xf32>
    %cst_104 = arith.constant 5.000000e-01 : f32
    %242 = vector.broadcast %cst_104 : f32 to vector<8x128xf32>
    %243 = arith.mulf %242, %241 : vector<8x128xf32>
    %cst_105 = arith.constant 5.000000e-01 : f32
    %244 = vector.broadcast %cst_105 : f32 to vector<8x128xf32>
    %245 = arith.addf %243, %244 : vector<8x128xf32>
    %246 = vector.extract_strided_slice %229 {offsets = [0, 256], sizes = [8, 128], strides = [1, 1]} : vector<8x512xf32> to vector<8x128xf32>
    %247 = math.tanh %246 : vector<8x128xf32>
    %248 = vector.extract_strided_slice %229 {offsets = [0, 384], sizes = [8, 128], strides = [1, 1]} : vector<8x512xf32> to vector<8x128xf32>
    %cst_106 = arith.constant 5.000000e-01 : f32
    %249 = vector.broadcast %cst_106 : f32 to vector<8x128xf32>
    %250 = arith.mulf %249, %248 : vector<8x128xf32>
    %251 = math.tanh %250 : vector<8x128xf32>
    %cst_107 = arith.constant 5.000000e-01 : f32
    %252 = vector.broadcast %cst_107 : f32 to vector<8x128xf32>
    %253 = arith.mulf %252, %251 : vector<8x128xf32>
    %cst_108 = arith.constant 5.000000e-01 : f32
    %254 = vector.broadcast %cst_108 : f32 to vector<8x128xf32>
    %255 = arith.addf %253, %254 : vector<8x128xf32>
    %256 = arith.mulf %245, %178 : vector<8x128xf32>
    %257 = arith.mulf %237, %247 : vector<8x128xf32>
    %258 = arith.addf %256, %257 : vector<8x128xf32>
    %259 = math.tanh %258 : vector<8x128xf32>
    %260 = arith.mulf %255, %259 : vector<8x128xf32>
    %c3_i32 = arith.constant 3 : i32
    %c8_i32_109 = arith.constant 8 : i32
    %261 = arith.muli %c3_i32, %c8_i32_109 : i32
    %262 = tpu.assume_multiple %261, 8 : i32
    %263 = arith.index_cast %262 : i32 to index
    %c0_110 = arith.constant 0 : index
    %264 = vector.load %arg9[%263, %c0_110] : memref<32x512xf32, #tpu.memory_space<vmem>>, vector<8x512xf32>
    %265 = arith.truncf %219 : vector<8x128xf32> to vector<8x128xbf16>
    %c0_111 = arith.constant 0 : index
    %c0_112 = arith.constant 0 : index
    %266 = vector.load %arg4[%c0_111, %c0_112] : memref<128x512xbf16, #tpu.memory_space<vmem>>, vector<128x512xbf16>
    %cst_113 = arith.constant dense<0.000000e+00> : vector<8x512xf32>
    %267 = tpu.matmul %265, %266, %cst_113 {dimension_numbers = #tpu.dot_dimension_numbers<[1], [0], [0], [1], [0, 0, 1, 1], [], []>} : vector<8x128xbf16>, vector<128x512xbf16>, vector<8x512xf32> -> vector<8x512xf32>
    %268 = arith.addf %264, %267 : vector<8x512xf32>
    %269 = vector.extract_strided_slice %268 {offsets = [0, 0], sizes = [8, 128], strides = [1, 1]} : vector<8x512xf32> to vector<8x128xf32>
    %cst_114 = arith.constant 5.000000e-01 : f32
    %270 = vector.broadcast %cst_114 : f32 to vector<8x128xf32>
    %271 = arith.mulf %270, %269 : vector<8x128xf32>
    %272 = math.tanh %271 : vector<8x128xf32>
    %cst_115 = arith.constant 5.000000e-01 : f32
    %273 = vector.broadcast %cst_115 : f32 to vector<8x128xf32>
    %274 = arith.mulf %273, %272 : vector<8x128xf32>
    %cst_116 = arith.constant 5.000000e-01 : f32
    %275 = vector.broadcast %cst_116 : f32 to vector<8x128xf32>
    %276 = arith.addf %274, %275 : vector<8x128xf32>
    %277 = vector.extract_strided_slice %268 {offsets = [0, 128], sizes = [8, 128], strides = [1, 1]} : vector<8x512xf32> to vector<8x128xf32>
    %cst_117 = arith.constant 5.000000e-01 : f32
    %278 = vector.broadcast %cst_117 : f32 to vector<8x128xf32>
    %279 = arith.mulf %278, %277 : vector<8x128xf32>
    %280 = math.tanh %279 : vector<8x128xf32>
    %cst_118 = arith.constant 5.000000e-01 : f32
    %281 = vector.broadcast %cst_118 : f32 to vector<8x128xf32>
    %282 = arith.mulf %281, %280 : vector<8x128xf32>
    %cst_119 = arith.constant 5.000000e-01 : f32
    %283 = vector.broadcast %cst_119 : f32 to vector<8x128xf32>
    %284 = arith.addf %282, %283 : vector<8x128xf32>
    %285 = vector.extract_strided_slice %268 {offsets = [0, 256], sizes = [8, 128], strides = [1, 1]} : vector<8x512xf32> to vector<8x128xf32>
    %286 = math.tanh %285 : vector<8x128xf32>
    %287 = vector.extract_strided_slice %268 {offsets = [0, 384], sizes = [8, 128], strides = [1, 1]} : vector<8x512xf32> to vector<8x128xf32>
    %cst_120 = arith.constant 5.000000e-01 : f32
    %288 = vector.broadcast %cst_120 : f32 to vector<8x128xf32>
    %289 = arith.mulf %288, %287 : vector<8x128xf32>
    %290 = math.tanh %289 : vector<8x128xf32>
    %cst_121 = arith.constant 5.000000e-01 : f32
    %291 = vector.broadcast %cst_121 : f32 to vector<8x128xf32>
    %292 = arith.mulf %291, %290 : vector<8x128xf32>
    %cst_122 = arith.constant 5.000000e-01 : f32
    %293 = vector.broadcast %cst_122 : f32 to vector<8x128xf32>
    %294 = arith.addf %292, %293 : vector<8x128xf32>
    %295 = arith.mulf %284, %217 : vector<8x128xf32>
    %296 = arith.mulf %276, %286 : vector<8x128xf32>
    %297 = arith.addf %295, %296 : vector<8x128xf32>
    %298 = math.tanh %297 : vector<8x128xf32>
    %299 = arith.mulf %294, %298 : vector<8x128xf32>
    %300 = arith.truncf %299 : vector<8x128xf32> to vector<8x128xbf16>
    %c0_123 = arith.constant 0 : index
    %c0_124 = arith.constant 0 : index
    %301 = vector.load %arg5[%c0_123, %c0_124] : memref<128x512xbf16, #tpu.memory_space<vmem>>, vector<128x512xbf16>
    %cst_125 = arith.constant dense<0.000000e+00> : vector<8x512xf32>
    %302 = tpu.matmul %300, %301, %cst_125 {dimension_numbers = #tpu.dot_dimension_numbers<[1], [0], [0], [1], [0, 0, 1, 1], [], []>} : vector<8x128xbf16>, vector<128x512xbf16>, vector<8x512xf32> -> vector<8x512xf32>
    %c0_126 = arith.constant 0 : index
    %c0_127 = arith.constant 0 : index
    %303 = vector.load %arg6[%c0_126, %c0_127] : memref<1x512xf32, #tpu.memory_space<vmem>>, vector<1x512xf32>
    %304 = vector.broadcast %303 : vector<1x512xf32> to vector<8x512xf32>
    %305 = arith.addf %302, %304 : vector<8x512xf32>
    %306 = arith.truncf %260 : vector<8x128xf32> to vector<8x128xbf16>
    %c0_128 = arith.constant 0 : index
    %c0_129 = arith.constant 0 : index
    %307 = vector.load %arg7[%c0_128, %c0_129] : memref<128x512xbf16, #tpu.memory_space<vmem>>, vector<128x512xbf16>
    %cst_130 = arith.constant dense<0.000000e+00> : vector<8x512xf32>
    %308 = tpu.matmul %306, %307, %cst_130 {dimension_numbers = #tpu.dot_dimension_numbers<[1], [0], [0], [1], [0, 0, 1, 1], [], []>} : vector<8x128xbf16>, vector<128x512xbf16>, vector<8x512xf32> -> vector<8x512xf32>
    %309 = arith.addf %305, %308 : vector<8x512xf32>
    %310 = vector.extract_strided_slice %309 {offsets = [0, 0], sizes = [8, 128], strides = [1, 1]} : vector<8x512xf32> to vector<8x128xf32>
    %cst_131 = arith.constant 5.000000e-01 : f32
    %311 = vector.broadcast %cst_131 : f32 to vector<8x128xf32>
    %312 = arith.mulf %311, %310 : vector<8x128xf32>
    %313 = math.tanh %312 : vector<8x128xf32>
    %cst_132 = arith.constant 5.000000e-01 : f32
    %314 = vector.broadcast %cst_132 : f32 to vector<8x128xf32>
    %315 = arith.mulf %314, %313 : vector<8x128xf32>
    %cst_133 = arith.constant 5.000000e-01 : f32
    %316 = vector.broadcast %cst_133 : f32 to vector<8x128xf32>
    %317 = arith.addf %315, %316 : vector<8x128xf32>
    %318 = vector.extract_strided_slice %309 {offsets = [0, 128], sizes = [8, 128], strides = [1, 1]} : vector<8x512xf32> to vector<8x128xf32>
    %cst_134 = arith.constant 5.000000e-01 : f32
    %319 = vector.broadcast %cst_134 : f32 to vector<8x128xf32>
    %320 = arith.mulf %319, %318 : vector<8x128xf32>
    %321 = math.tanh %320 : vector<8x128xf32>
    %cst_135 = arith.constant 5.000000e-01 : f32
    %322 = vector.broadcast %cst_135 : f32 to vector<8x128xf32>
    %323 = arith.mulf %322, %321 : vector<8x128xf32>
    %cst_136 = arith.constant 5.000000e-01 : f32
    %324 = vector.broadcast %cst_136 : f32 to vector<8x128xf32>
    %325 = arith.addf %323, %324 : vector<8x128xf32>
    %326 = vector.extract_strided_slice %309 {offsets = [0, 256], sizes = [8, 128], strides = [1, 1]} : vector<8x512xf32> to vector<8x128xf32>
    %327 = math.tanh %326 : vector<8x128xf32>
    %328 = vector.extract_strided_slice %309 {offsets = [0, 384], sizes = [8, 128], strides = [1, 1]} : vector<8x512xf32> to vector<8x128xf32>
    %cst_137 = arith.constant 5.000000e-01 : f32
    %329 = vector.broadcast %cst_137 : f32 to vector<8x128xf32>
    %330 = arith.mulf %329, %328 : vector<8x128xf32>
    %331 = math.tanh %330 : vector<8x128xf32>
    %cst_138 = arith.constant 5.000000e-01 : f32
    %332 = vector.broadcast %cst_138 : f32 to vector<8x128xf32>
    %333 = arith.mulf %332, %331 : vector<8x128xf32>
    %cst_139 = arith.constant 5.000000e-01 : f32
    %334 = vector.broadcast %cst_139 : f32 to vector<8x128xf32>
    %335 = arith.addf %333, %334 : vector<8x128xf32>
    %336 = arith.mulf %325, %258 : vector<8x128xf32>
    %337 = arith.mulf %317, %327 : vector<8x128xf32>
    %338 = arith.addf %336, %337 : vector<8x128xf32>
    %339 = math.tanh %338 : vector<8x128xf32>
    %340 = arith.mulf %335, %339 : vector<8x128xf32>
    %c4_i32 = arith.constant 4 : i32
    %c0_140 = arith.constant 0 : index
    %c0_141 = arith.constant 0 : index
    %341 = vector.load %arg10[%c0_140, %c0_141] : memref<8x128xf32, #tpu.memory_space<vmem>>, vector<8x128xf32>
    tpu.vector_store %arg10[%c0_140, %c0_141], %299 {strides = array<i32>} : memref<8x128xf32, #tpu.memory_space<vmem>>, vector<8x128xf32>,
    %c0_142 = arith.constant 0 : index
    %c0_143 = arith.constant 0 : index
    %342 = vector.load %arg11[%c0_142, %c0_143] : memref<8x128xf32, #tpu.memory_space<vmem>>, vector<8x128xf32>
    tpu.vector_store %arg11[%c0_142, %c0_143], %297 {strides = array<i32>} : memref<8x128xf32, #tpu.memory_space<vmem>>, vector<8x128xf32>,
    %c0_144 = arith.constant 0 : index
    %c0_145 = arith.constant 0 : index
    %343 = vector.load %arg12[%c0_144, %c0_145] : memref<8x128xf32, #tpu.memory_space<vmem>>, vector<8x128xf32>
    tpu.vector_store %arg12[%c0_144, %c0_145], %340 {strides = array<i32>} : memref<8x128xf32, #tpu.memory_space<vmem>>, vector<8x128xf32>,
    %c0_146 = arith.constant 0 : index
    %c0_147 = arith.constant 0 : index
    %344 = vector.load %arg13[%c0_146, %c0_147] : memref<8x128xf32, #tpu.memory_space<vmem>>, vector<8x128xf32>
    tpu.vector_store %arg13[%c0_146, %c0_147], %338 {strides = array<i32>} : memref<8x128xf32, #tpu.memory_space<vmem>>, vector<8x128xf32>,
    %c0_148 = arith.constant 0 : index
    %c0_149 = arith.constant 0 : index
    %345 = vector.load %arg8[%c0_148, %c0_149] : memref<8x128xf32, #tpu.memory_space<vmem>>, vector<8x128xf32>
    tpu.vector_store %arg8[%c0_148, %c0_149], %340 {strides = array<i32>} : memref<8x128xf32, #tpu.memory_space<vmem>>, vector<8x128xf32>,
    return
  }
  func.func @transform_0(%arg0: i32) -> (i32, i32) {
    %c0_i32 = arith.constant 0 : i32
    %c0_i32_0 = arith.constant 0 : i32
    return %arg0, %c0_i32 : i32, i32
  }
  func.func @transform_1(%arg0: i32) -> (i32, i32) {
    %c0_i32 = arith.constant 0 : i32
    %c0_i32_0 = arith.constant 0 : i32
    %c0_i32_1 = arith.constant 0 : i32
    return %c0_i32, %c0_i32_0 : i32, i32
  }
  func.func @transform_2(%arg0: i32) -> (i32, i32) {
    %c0_i32 = arith.constant 0 : i32
    %c0_i32_0 = arith.constant 0 : i32
    %c0_i32_1 = arith.constant 0 : i32
    return %c0_i32, %c0_i32_0 : i32, i32
  }
  func.func @transform_3(%arg0: i32) -> (i32, i32) {
    %c0_i32 = arith.constant 0 : i32
    %c0_i32_0 = arith.constant 0 : i32
    %c0_i32_1 = arith.constant 0 : i32
    return %c0_i32, %c0_i32_0 : i32, i32
  }
  func.func @transform_4(%arg0: i32) -> (i32, i32) {
    %c0_i32 = arith.constant 0 : i32
    %c0_i32_0 = arith.constant 0 : i32
    %c0_i32_1 = arith.constant 0 : i32
    return %c0_i32, %c0_i32_0 : i32, i32
  }
  func.func @transform_5(%arg0: i32) -> (i32, i32) {
    %c0_i32 = arith.constant 0 : i32
    %c0_i32_0 = arith.constant 0 : i32
    %c0_i32_1 = arith.constant 0 : i32
    return %c0_i32, %c0_i32_0 : i32, i32
  }
  func.func @transform_6(%arg0: i32) -> (i32, i32) {
    %c0_i32 = arith.constant 0 : i32
    %c0_i32_0 = arith.constant 0 : i32
    %c0_i32_1 = arith.constant 0 : i32
    return %c0_i32, %c0_i32_0 : i32, i32
  }
  func.func @transform_7(%arg0: i32) -> (i32, i32) {
    %c0_i32 = arith.constant 0 : i32
    %c0_i32_0 = arith.constant 0 : i32
    %c0_i32_1 = arith.constant 0 : i32
    return %c0_i32, %c0_i32_0 : i32, i32
  }
}

</mosaic_0001>

<llo_original>
// kernel: encoder_forward.1
$region0: #{encoder_forward.1}
  #allocation0 [shape = 'u32[]', space=smem, size = 0x4, offset = 0x4, fixed_abs, tag = 'smem constant byte address 0x4 - core index']
  #allocation1 [shape = 'u32[144,128]{1,0:T(1,128)}', space=vmem, size = 0x12000, scoped, tag = 'internal scratch']
  #allocation2 [shape = 'f32[32,512]{1,0:T(8,128)}', space=vmem, size = 0x10000, scoped, tag = 'scratch operand']
  #allocation3 [shape = 'f32[8,128]{1,0:T(8,128)}', space=vmem, size = 0x1000, scoped, tag = 'scratch operand']
  #allocation4 [shape = 'f32[8,128]{1,0:T(8,128)}', space=vmem, size = 0x1000, scoped, tag = 'scratch operand']
  #allocation5 [shape = 'f32[8,128]{1,0:T(8,128)}', space=vmem, size = 0x1000, scoped, tag = 'scratch operand']
  #allocation6 [shape = 'f32[8,128]{1,0:T(8,128)}', space=vmem, size = 0x1000, scoped, tag = 'scratch operand']
  %s0 = inlined_call_operand.vmem [shape: bf16[64,8], index: 0, kind: input, shape index: {}]
  %s1 = inlined_call_operand.vmem [shape: bf16[8,512], index: 1, kind: input, shape index: {}]
  %s2 = inlined_call_operand.vmem [shape: f32[1,512], index: 2, kind: input, shape index: {}]
  %s3 = inlined_call_operand.hbm [shape: bf16[128,512], index: 3, kind: input, shape index: {}]
  %s4 = inlined_call_operand.hbm [shape: bf16[128,512], index: 4, kind: input, shape index: {}]
  %s5 = inlined_call_operand.vmem [shape: f32[1,512], index: 5, kind: input, shape index: {}]
  %s6 = inlined_call_operand.hbm [shape: bf16[128,512], index: 6, kind: input, shape index: {}]
  %s7 = inlined_call_operand.vmem [shape: f32[8,128], index: 7, kind: output, shape index: {}]
  %s8 = sld [smem:[#allocation0]]
  $region77: #{encoder_forward.1} parent=0
    _
  %s10 = ssub.s32 1, %s8
  %s11 = scalar_select 0, %s10, %s8
  $region1: #{encoder_forward.1} parent=0
    #allocation7 [shape = 'u8[131072]{0}', space=vmem, size = 0x20000, scoped, tag = 'input window, operand 3, single buffered']
    #allocation8 [shape = 's32[2]{0}', space=sflag, size = 0x8, scoped, tag = 'scoped memory for encoder_forward.1']
    #allocation9 [shape = 'u8[131072]{0}', space=vmem, size = 0x20000, scoped, tag = 'input window, operand 4, single buffered']
    #allocation10 [shape = 's32[1]{0}', space=sflag, size = 0x4, scoped, tag = 'scoped memory for encoder_forward.1']
    #allocation11 [shape = 'u8[131072]{0}', space=vmem, size = 0x20000, scoped, tag = 'input window, operand 6, single buffered']
    %12 = vsyncpa [#allocation8], 0
    %13 = vsyncpa [#allocation10], 0
    loop: start=0, step=1, limit=4
    $region2: #{encoder_forward.1} parent=1 // loop_pre_header
      _
    $region3: #{encoder_forward.1} parent=1 // loop_header
      %s15 = sphi 0, %s19
      %p16 = scmp.ge.s32.totalorder %s15, 4
      %s25 = sphi 0, %s27
      %s28 = sphi 0, %s25
      %s29 = sphi 0, %s28
      %s45 = sphi 0, %s29
      %s49 = sphi 0, %s49
      %s51 = sphi 0, %s49
      %s52 = sphi 0, %s51
      %s66 = sphi 0, %s52
      %s70 = sphi 0, %s70
      %s72 = sphi 0, %s70
      %s73 = sphi 0, %s72
      %s87 = sphi 0, %s73
      %s91 = sphi 0, %s91
      %s93 = sphi 0, %s91
      %s94 = sphi 0, %s93
      %s108 = sphi 0, %s94
      %s112 = sphi 0, %s112
      %s114 = sphi 0, %s112
      %s115 = sphi 0, %s114
      %s129 = sphi 0, %s115
      %s133 = sphi 0, %s133
      %s135 = sphi 0, %s133
      %s136 = sphi 0, %s135
      %s150 = sphi 0, %s136
      %s154 = sphi 0, %s154
      %s156 = sphi 0, %s154
      %s157 = sphi 0, %s156
      %s171 = sphi 0, %s157
      %s175 = sphi 0, %s175
      %s177 = sphi 0, %s175
      %s178 = sphi 0, %s177
      %s192 = sphi 0, %s178
    $region4: #{encoder_forward.1} parent=1 // loop_header_branch
      %18 = sbr.rel (%p16) target = $region8
    $region5: #{encoder_forward.1} parent=1 // loop_body
      %s20 = ssub.s32 %s15, 1
      %s21 = ssub.s32 %s15, 2
      %s22 = sadd.s32 %s15, 1
      %s23 = ssub.s32 %s15, %s22
      %p24 = scmp.eq.s32.totalorder %s23, 0
      %s26 = sadd.s32 %s25, 1
      %s27 = scalar_select %p24, %s25, %s26
      %p30 = pneg %p24
      %p31 = scmp.eq.s32.totalorder %s15, 1
      %p32 = por %p30, %p31
      %p33 = scmp.ne.s32.totalorder %s25, %s28
      %p34 = scmp.eq.s32.totalorder %s15, 0
      %p35 = por %p33, %p34
      %p36 = scmp.ne.s32.totalorder %s25, %s28
      %p37 = scmp.eq.s32.totalorder %s20, 1
      %p38 = por %p36, %p37
      %p39 = scmp.ne.s32.totalorder %s28, %s29
      %p40 = scmp.eq.s32.totalorder %s20, 0
      %p41 = por %p39, %p40
      %p42 = scmp.ne.s32.totalorder %s28, %s29
      %p43 = scmp.eq.s32.totalorder %s21, 1
      %p44 = por %p42, %p43
      %p46 = scmp.ne.s32.totalorder %s29, %s45
      %p47 = scmp.eq.s32.totalorder %s21, 0
      %p48 = por %p46, %p47
      %s50 = sadd.s32 %s49, 1
      %p53 = scmp.eq.s32.totalorder %s15, 1
      %p54 = scmp.ne.s32.totalorder %s49, %s51
      %p55 = scmp.eq.s32.totalorder %s15, 0
      %p56 = por %p54, %p55
      %p57 = scmp.ne.s32.totalorder %s49, %s51
      %p58 = scmp.eq.s32.totalorder %s20, 1
      %p59 = por %p57, %p58
      %p60 = scmp.ne.s32.totalorder %s51, %s52
      %p61 = scmp.eq.s32.totalorder %s20, 0
      %p62 = por %p60, %p61
      %p63 = scmp.ne.s32.totalorder %s51, %s52
      %p64 = scmp.eq.s32.totalorder %s21, 1
      %p65 = por %p63, %p64
      %p67 = scmp.ne.s32.totalorder %s52, %s66
      %p68 = scmp.eq.s32.totalorder %s21, 0
      %p69 = por %p67, %p68
      %s71 = sadd.s32 %s70, 1
      %p74 = scmp.eq.s32.totalorder %s15, 1
      %p75 = scmp.ne.s32.totalorder %s70, %s72
      %p76 = scmp.eq.s32.totalorder %s15, 0
      %p77 = por %p75, %p76
      %p78 = scmp.ne.s32.totalorder %s70, %s72
      %p79 = scmp.eq.s32.totalorder %s20, 1
      %p80 = por %p78, %p79
      %p81 = scmp.ne.s32.totalorder %s72, %s73
      %p82 = scmp.eq.s32.totalorder %s20, 0
      %p83 = por %p81, %p82
      %p84 = scmp.ne.s32.totalorder %s72, %s73
      %p85 = scmp.eq.s32.totalorder %s21, 1
      %p86 = por %p84, %p85
      %p88 = scmp.ne.s32.totalorder %s73, %s87
      %p89 = scmp.eq.s32.totalorder %s21, 0
      %p90 = por %p88, %p89
      %s92 = sadd.s32 %s91, 1
      %p95 = scmp.eq.s32.totalorder %s15, 1
      %p96 = scmp.ne.s32.totalorder %s91, %s93
      %p97 = scmp.eq.s32.totalorder %s15, 0
      %p98 = por %p96, %p97
      %p99 = scmp.ne.s32.totalorder %s91, %s93
      %p100 = scmp.eq.s32.totalorder %s20, 1
      %p101 = por %p99, %p100
      %p102 = scmp.ne.s32.totalorder %s93, %s94
      %p103 = scmp.eq.s32.totalorder %s20, 0
      %p104 = por %p102, %p103
      %p105 = scmp.ne.s32.totalorder %s93, %s94
      %p106 = scmp.eq.s32.totalorder %s21, 1
      %p107 = por %p105, %p106
      %p109 = scmp.ne.s32.totalorder %s94, %s108
      %p110 = scmp.eq.s32.totalorder %s21, 0
      %p111 = por %p109, %p110
      %s113 = sadd.s32 %s112, 1
      %p116 = scmp.eq.s32.totalorder %s15, 1
      %p117 = scmp.ne.s32.totalorder %s112, %s114
      %p118 = scmp.eq.s32.totalorder %s15, 0
      %p119 = por %p117, %p118
      %p120 = scmp.ne.s32.totalorder %s112, %s114
      %p121 = scmp.eq.s32.totalorder %s20, 1
      %p122 = por %p120, %p121
      %p123 = scmp.ne.s32.totalorder %s114, %s115
      %p124 = scmp.eq.s32.totalorder %s20, 0
      %p125 = por %p123, %p124
      %p126 = scmp.ne.s32.totalorder %s114, %s115
      %p127 = scmp.eq.s32.totalorder %s21, 1
      %p128 = por %p126, %p127
      %p130 = scmp.ne.s32.totalorder %s115, %s129
      %p131 = scmp.eq.s32.totalorder %s21, 0
      %p132 = por %p130, %p131
      %s134 = sadd.s32 %s133, 1
      %p137 = scmp.eq.s32.totalorder %s15, 1
      %p138 = scmp.ne.s32.totalorder %s133, %s135
      %p139 = scmp.eq.s32.totalorder %s15, 0
      %p140 = por %p138, %p139
      %p141 = scmp.ne.s32.totalorder %s133, %s135
      %p142 = scmp.eq.s32.totalorder %s20, 1
      %p143 = por %p141, %p142
      %p144 = scmp.ne.s32.totalorder %s135, %s136
      %p145 = scmp.eq.s32.totalorder %s20, 0
      %p146 = por %p144, %p145
      %p147 = scmp.ne.s32.totalorder %s135, %s136
      %p148 = scmp.eq.s32.totalorder %s21, 1
      %p149 = por %p147, %p148
      %p151 = scmp.ne.s32.totalorder %s136, %s150
      %p152 = scmp.eq.s32.totalorder %s21, 0
      %p153 = por %p151, %p152
      %s155 = sadd.s32 %s154, 1
      %p158 = scmp.eq.s32.totalorder %s15, 1
      %p159 = scmp.ne.s32.totalorder %s154, %s156
      %p160 = scmp.eq.s32.totalorder %s15, 0
      %p161 = por %p159, %p160
      %p162 = scmp.ne.s32.totalorder %s154, %s156
      %p163 = scmp.eq.s32.totalorder %s20, 1
      %p164 = por %p162, %p163
      %p165 = scmp.ne.s32.totalorder %s156, %s157
      %p166 = scmp.eq.s32.totalorder %s20, 0
      %p167 = por %p165, %p166
      %p168 = scmp.ne.s32.totalorder %s156, %s157
      %p169 = scmp.eq.s32.totalorder %s21, 1
      %p170 = por %p168, %p169
      %p172 = scmp.ne.s32.totalorder %s157, %s171
      %p173 = scmp.eq.s32.totalorder %s21, 0
      %p174 = por %p172, %p173
      %s176 = sadd.s32 %s175, 1
      %p179 = scmp.eq.s32.totalorder %s15, 1
      %p180 = scmp.ne.s32.totalorder %s175, %s177
      %p181 = scmp.eq.s32.totalorder %s15, 0
      %p182 = por %p180, %p181
      %p183 = scmp.ne.s32.totalorder %s175, %s177
      %p184 = scmp.eq.s32.totalorder %s20, 1
      %p185 = por %p183, %p184
      %p186 = scmp.ne.s32.totalorder %s177, %s178
      %p187 = scmp.eq.s32.totalorder %s20, 0
      %p188 = por %p186, %p187
      %p189 = scmp.ne.s32.totalorder %s177, %s178
      %p190 = scmp.eq.s32.totalorder %s21, 1
      %p191 = por %p189, %p190
      %p193 = scmp.ne.s32.totalorder %s178, %s192
      %p194 = scmp.eq.s32.totalorder %s21, 0
      %p195 = por %p193, %p194
      %p196 = scmp.le.s32.totalorder 1, %s15
      %p197 = scmp.lt.s32.totalorder %s15, 3
      %p198 = pnand %p196, %p197
      %p199 = pneg %p198
      // Predicated region
      $region9: #{encoder_forward.1} parent=5 // pred_check
        _
      $region10: #{encoder_forward.1} parent=5 // pred_check_branch
        %201 = sbr.rel (%p198) target = $region12
      $region11: #{encoder_forward.1} parent=5 // pred_region
        %s202 = ssub.s32 %s15, 1
        // Predicated region
        $region13: #{encoder_forward.1} parent=11 // pred_check
          %p203 = pneg %p62
        $region14: #{encoder_forward.1} parent=11 // pred_check_branch
          %205 = sbr.rel (%p203) target = $region16
        $region15: #{encoder_forward.1} parent=11 // pred_region
          _
        $region16: #{encoder_forward.1} parent=11 // pred_fallthru
          _
        // Predicated region
        $region17: #{encoder_forward.1} parent=11 // pred_check
          %p206 = pneg %p83
        $region18: #{encoder_forward.1} parent=11 // pred_check_branch
          %208 = sbr.rel (%p206) target = $region20
        $region19: #{encoder_forward.1} parent=11 // pred_region
          _
        $region20: #{encoder_forward.1} parent=11 // pred_fallthru
          _
        // Predicated region
        $region21: #{encoder_forward.1} parent=11 // pred_check
          %p209 = pneg %p104
        $region22: #{encoder_forward.1} parent=11 // pred_check_branch
          %211 = sbr.rel (%p209) target = $region24
        $region23: #{encoder_forward.1} parent=11 // pred_region
          %s213 = ssub.s32 4096, 4096
          %214 = vsyncadd [#allocation8], %s213
          %s215 = sshll.u32 [#allocation7], 4
          %s216 = int_to_ptr.vmem [resolvable:$true] %s215
          %221 = dma.hbm_to_vmem [thread:$0]  %s3, 4096, %s216, [#allocation8], 256, 256, 16
        $region24: #{encoder_forward.1} parent=11 // pred_fallthru
          _
        // Predicated region
        $region25: #{encoder_forward.1} parent=11 // pred_check
          %p222 = pneg %p125
        $region26: #{encoder_forward.1} parent=11 // pred_check_branch
          %224 = sbr.rel (%p222) target = $region28
        $region27: #{encoder_forward.1} parent=11 // pred_region
          %s226 = ssub.s32 4096, 4096
          %227 = vsyncadd [#allocation10], %s226
          %s228 = sshll.u32 [#allocation9], 4
          %s229 = int_to_ptr.vmem [resolvable:$true] %s228
          %234 = dma.hbm_to_vmem [thread:$0]  %s4, 4096, %s229, [#allocation10], 256, 256, 16
        $region28: #{encoder_forward.1} parent=11 // pred_fallthru
          _
        // Predicated region
        $region29: #{encoder_forward.1} parent=11 // pred_check
          %p235 = pneg %p146
        $region30: #{encoder_forward.1} parent=11 // pred_check_branch
          %237 = sbr.rel (%p235) target = $region32
        $region31: #{encoder_forward.1} parent=11 // pred_region
          _
        $region32: #{encoder_forward.1} parent=11 // pred_fallthru
          _
        // Predicated region
        $region33: #{encoder_forward.1} parent=11 // pred_check
          %p238 = pneg %p167
        $region34: #{encoder_forward.1} parent=11 // pred_check_branch
          %240 = sbr.rel (%p238) target = $region36
        $region35: #{encoder_forward.1} parent=11 // pred_region
          %s242 = ssub.s32 4096, 4096
          %243 = vsyncadd [#allocation10], %s242
          %s244 = sshll.u32 [#allocation11], 4
          %s245 = int_to_ptr.vmem [resolvable:$true] %s244
          %250 = dma.hbm_to_vmem [thread:$0]  %s6, 4096, %s245, [#allocation10], 256, 256, 16
        $region36: #{encoder_forward.1} parent=11 // pred_fallthru
          _
      $region12: #{encoder_forward.1} parent=5 // pred_fallthru
        _
      %p251 = scmp.lt.s32.totalorder %s15, 2
      // Predicated region
      $region37: #{encoder_forward.1} parent=5 // pred_check
        %p252 = pneg %p251
      $region38: #{encoder_forward.1} parent=5 // pred_check_branch
        %254 = sbr.rel (%p252) target = $region40
      $region39: #{encoder_forward.1} parent=5 // pred_region
        // Predicated region
        $region41: #{encoder_forward.1} parent=39 // pred_check
          %p255 = pneg %p35
        $region42: #{encoder_forward.1} parent=39 // pred_check_branch
          %257 = sbr.rel (%p255) target = $region44
        $region43: #{encoder_forward.1} parent=39 // pred_region
          %s258 = smul.u32 4, %s15
          %p259 = scmp.lt.s32.totalorder %s258, 7
          %s260 = scalar_select %p259, %s258, 7
          %s261 = smul.addr %s260, 4
          %s262 = scalar_lea.vmem %s0, %s261
          %s263 = smul.u32 4, %s15
        $region44: #{encoder_forward.1} parent=39 // pred_fallthru
          _
      $region40: #{encoder_forward.1} parent=5 // pred_fallthru
        _
      %p264 = scmp.le.s32.totalorder 1, %s15
      %p265 = scmp.lt.s32.totalorder %s15, 3
      %p266 = pnand %p264, %p265
      %p267 = pneg %p266
      // Predicated region
      $region45: #{encoder_forward.1} parent=5 // pred_check
        _
      $region46: #{encoder_forward.1} parent=5 // pred_check_branch
        %269 = sbr.rel (%p266) target = $region48
      $region47: #{encoder_forward.1} parent=5 // pred_region
        %s270 = ssub.s32 %s15, 1
        // Predicated region
        $region49: #{encoder_forward.1} parent=47 // pred_check
          %p271 = pneg %p104
        $region50: #{encoder_forward.1} parent=47 // pred_check_branch
          %273 = sbr.rel (%p271) target = $region52
        $region51: #{encoder_forward.1} parent=47 // pred_region
          %274 = dma.done [#allocation8], 4096
        $region52: #{encoder_forward.1} parent=47 // pred_fallthru
          _
        // Predicated region
        $region53: #{encoder_forward.1} parent=47 // pred_check
          %p275 = pneg %p125
        $region54: #{encoder_forward.1} parent=47 // pred_check_branch
          %277 = sbr.rel (%p275) target = $region56
        $region55: #{encoder_forward.1} parent=47 // pred_region
          %278 = dma.done [#allocation10], 4096
        $region56: #{encoder_forward.1} parent=47 // pred_fallthru
          _
        // Predicated region
        $region57: #{encoder_forward.1} parent=47 // pred_check
          %p279 = pneg %p167
        $region58: #{encoder_forward.1} parent=47 // pred_check_branch
          %281 = sbr.rel (%p279) target = $region60
        $region59: #{encoder_forward.1} parent=47 // pred_region
          %282 = dma.done [#allocation10], 4096
        $region60: #{encoder_forward.1} parent=47 // pred_fallthru
          _
        %s283 = smul.u32 4, %s20
        %p284 = scmp.lt.s32.totalorder %s283, 7
        %s285 = scalar_select %p284, %s283, 7
        %s286 = smul.addr %s285, 4
        %s287 = scalar_lea.vmem %s0, %s286
        %p288 = pneg %p41
        %p289 = pneg %p38
        %p290 = pneg %p62
        %p291 = pneg %p59
        %p292 = pneg %p83
        %p293 = pneg %p80
        %p294 = pneg %p104
        %p295 = pneg %p101
        %p296 = pneg %p125
        %p297 = pneg %p122
        %p298 = pneg %p146
        %p299 = pneg %p143
        %p300 = pneg %p167
        %p301 = pneg %p164
        %p302 = pneg %p188
        %p303 = pneg %p185
        %s304 = smul.u32 4, %s20
        %p305 = scmp.lt.s32.totalorder %s304, 7
        %s306 = scalar_select %p305, %s304, 7
        %s307 = smul.addr %s306, 4
        %s308 = scalar_lea.vmem %s0, %s307
        %s309 = smul.u32 4, %s20
        %p311 = scmp.eq.s32.totalorder %s20, 0
        // Predicated region
        $region61: #{encoder_forward.1} parent=47 // pred_check
          %p312 = pneg %p311
        $region62: #{encoder_forward.1} parent=47 // pred_check_branch
          %314 = sbr.rel (%p312) target = $region64
        $region63: #{encoder_forward.1} parent=47 // pred_region
          %315 = vst [vmem:[#allocation3] sm:$0xff] 0.0
          %316 = vst [vmem:[#allocation4] sm:$0xff] 0.0
          %317 = vst [vmem:[#allocation5] sm:$0xff] 0.0
          %318 = vst [vmem:[#allocation6] sm:$0xff] 0.0
        $region64: #{encoder_forward.1} parent=47 // pred_fallthru
          _
        %v319 = vld [vmem:[%s308] sm:$0xf]
        %v320 = vld [vmem:[%s308 + $0x4] sm:$0xf]
        %v321 = vld [vmem:[%s308 + $0x8] sm:$0xf]
        %v322 = vld [vmem:[%s308 + $0xc] sm:$0xf]
        %v323 = vunpack.c.l.bf16 %v319
        %v324 = vunpack.c.l.bf16 %v320
        %v325 = vunpack.c.l.bf16 %v321
        %v326 = vunpack.c.l.bf16 %v322
        %v327 = vld [vmem:[%s1] sm:$0x11]
        %v328 = vld [vmem:[%s1 + $0x8] sm:$0x11]
        %v329 = vunpack.c.l.bf16 %v327
        %v330 = vunpack.c.h.bf16 %v327
        %v331 = vunpack.c.l.bf16 %v328
        %v332 = vunpack.c.h.bf16 %v328
        %334 = vset.pattern.permute.xlu0 0
        %335 = vperm.xlu0 %334, %v323
        %v336 = vpop.permute.xlu0 %335
        %339 = vset.pattern.permute.xlu0 0
        %340 = vperm.xlu0 %339, %v324
        %v341 = vpop.permute.xlu0 %340
        %344 = vset.pattern.permute.xlu0 0
        %345 = vperm.xlu0 %344, %v325
        %v346 = vpop.permute.xlu0 %345
        %349 = vset.pattern.permute.xlu0 0
        %350 = vperm.xlu0 %349, %v326
        %v351 = vpop.permute.xlu0 %350
        %v353 = vlaneseq
        %v354 = vshrl.u32 %v353, 7
        %v355 = vsub.s32 0, %v354
        %v356 = vrot.slane %v329, %v355
        %v357 = vlaneseq
        %v358 = vshrl.u32 %v357, 7
        %v359 = vsub.s32 0, %v358
        %v360 = vrot.slane %v330, %v359
        %v361 = vlaneseq
        %v362 = vshrl.u32 %v361, 7
        %v363 = vsub.s32 0, %v362
        %v364 = vrot.slane %v331, %v363
        %v365 = vlaneseq
        %v366 = vshrl.u32 %v365, 7
        %v367 = vsub.s32 0, %v366
        %v368 = vrot.slane %v332, %v367
        %v369 = vmul.f32 %v336, %v356
        %v370 = vmul.f32 %v336, %v360
        %v371 = vmul.f32 %v336, %v364
        %v372 = vmul.f32 %v336, %v368
        %v373 = vmul.f32 %v341, %v356
        %v374 = vmul.f32 %v341, %v360
        %v375 = vmul.f32 %v341, %v364
        %v376 = vmul.f32 %v341, %v368
        %v377 = vmul.f32 %v346, %v356
        %v378 = vmul.f32 %v346, %v360
        %v379 = vmul.f32 %v346, %v364
        %v380 = vmul.f32 %v346, %v368
        %v381 = vmul.f32 %v351, %v356
        %v382 = vmul.f32 %v351, %v360
        %v383 = vmul.f32 %v351, %v364
        %v384 = vmul.f32 %v351, %v368
        %v385 = vadd.f32 %v369, 0.0
        %v386 = vadd.f32 %v370, 0.0
        %v387 = vadd.f32 %v371, 0.0
        %v388 = vadd.f32 %v372, 0.0
        %v389 = vadd.f32 %v373, 0.0
        %v390 = vadd.f32 %v374, 0.0
        %v391 = vadd.f32 %v375, 0.0
        %v392 = vadd.f32 %v376, 0.0
        %v393 = vadd.f32 %v377, 0.0
        %v394 = vadd.f32 %v378, 0.0
        %v395 = vadd.f32 %v379, 0.0
        %v396 = vadd.f32 %v380, 0.0
        %v397 = vadd.f32 %v381, 0.0
        %v398 = vadd.f32 %v382, 0.0
        %v399 = vadd.f32 %v383, 0.0
        %v400 = vadd.f32 %v384, 0.0
        %v401 = vld [vmem:[%s2] sm:$0xf]
        %v403 = vlaneseq
        %v404 = vshrl.u32 %v403, 7
        %v405 = vsub.s32 0, %v404
        %v406 = vrot.slane %v401, %v405
        %v407 = vlaneseq
        %v408 = vshrl.u32 %v407, 7
        %v409 = vsub.s32 1, %v408
        %v410 = vrot.slane %v401, %v409
        %v411 = vlaneseq
        %v412 = vshrl.u32 %v411, 7
        %v413 = vsub.s32 2, %v412
        %v414 = vrot.slane %v401, %v413
        %v415 = vlaneseq
        %v416 = vshrl.u32 %v415, 7
        %v417 = vsub.s32 3, %v416
        %v418 = vrot.slane %v401, %v417
        %v423 = vadd.f32 %v385, %v406
        %v424 = vadd.f32 %v386, %v410
        %v425 = vadd.f32 %v387, %v414
        %v426 = vadd.f32 %v388, %v418
        %v427 = vadd.f32 %v389, %v406
        %v428 = vadd.f32 %v390, %v410
        %v429 = vadd.f32 %v391, %v414
        %v430 = vadd.f32 %v392, %v418
        %v431 = vadd.f32 %v393, %v406
        %v432 = vadd.f32 %v394, %v410
        %v433 = vadd.f32 %v395, %v414
        %v434 = vadd.f32 %v396, %v418
        %v435 = vadd.f32 %v397, %v406
        %v436 = vadd.f32 %v398, %v410
        %v437 = vadd.f32 %v399, %v414
        %v438 = vadd.f32 %v400, %v418
        %439 = vst [vmem:[#allocation2] sm:$0xff] %v423
        %440 = vst [vmem:[#allocation2 + $0x8] sm:$0xff] %v424
        %441 = vst [vmem:[#allocation2 + $0x10] sm:$0xff] %v425
        %442 = vst [vmem:[#allocation2 + $0x18] sm:$0xff] %v426
        %443 = vst [vmem:[#allocation2 + $0x20] sm:$0xff] %v427
        %444 = vst [vmem:[#allocation2 + $0x28] sm:$0xff] %v428
        %445 = vst [vmem:[#allocation2 + $0x30] sm:$0xff] %v429
        %446 = vst [vmem:[#allocation2 + $0x38] sm:$0xff] %v430
        %447 = vst [vmem:[#allocation2 + $0x40] sm:$0xff] %v431
        %448 = vst [vmem:[#allocation2 + $0x48] sm:$0xff] %v432
        %449 = vst [vmem:[#allocation2 + $0x50] sm:$0xff] %v433
        %450 = vst [vmem:[#allocation2 + $0x58] sm:$0xff] %v434
        %451 = vst [vmem:[#allocation2 + $0x60] sm:$0xff] %v435
        %452 = vst [vmem:[#allocation2 + $0x68] sm:$0xff] %v436
        %453 = vst [vmem:[#allocation2 + $0x70] sm:$0xff] %v437
        %454 = vst [vmem:[#allocation2 + $0x78] sm:$0xff] %v438
        %v455 = vld [vmem:[#allocation3] sm:$0xff]
        %v456 = vld [vmem:[#allocation4] sm:$0xff]
        %v457 = vld [vmem:[#allocation5] sm:$0xff]
        %v458 = vld [vmem:[#allocation6] sm:$0xff]
        %s459 = smul.u32 0, 4
        %s460 = smul.addr %s459, 8
        %s461 = scalar_lea.vmem [#allocation2], %s460
        %v462 = vld [vmem:[%s461] sm:$0xff]
        %v463 = vld [vmem:[%s461 + $0x8] sm:$0xff]
        %v464 = vld [vmem:[%s461 + $0x10] sm:$0xff]
        %v465 = vld [vmem:[%s461 + $0x18] sm:$0xff]
        %v466 = vpack.c.bf16 %v455, %v455
        %v467 = vld [vmem:[#allocation7] sm:$0xff]
        %v468 = vld [vmem:[#allocation7 + $0x8] sm:$0xff]
        %v469 = vld [vmem:[#allocation7 + $0x10] sm:$0xff]
        %v470 = vld [vmem:[#allocation7 + $0x18] sm:$0xff]
        %v471 = vld [vmem:[#allocation7 + $0x20] sm:$0xff]
        %v472 = vld [vmem:[#allocation7 + $0x28] sm:$0xff]
        %v473 = vld [vmem:[#allocation7 + $0x30] sm:$0xff]
        %v474 = vld [vmem:[#allocation7 + $0x38] sm:$0xff]
        %v475 = vld [vmem:[#allocation7 + $0x40] sm:$0xff]
        %v476 = vld [vmem:[#allocation7 + $0x48] sm:$0xff]
        %v477 = vld [vmem:[#allocation7 + $0x50] sm:$0xff]
        %v478 = vld [vmem:[#allocation7 + $0x58] sm:$0xff]
        %v479 = vld [vmem:[#allocation7 + $0x60] sm:$0xff]
        %v480 = vld [vmem:[#allocation7 + $0x68] sm:$0xff]
        %v481 = vld [vmem:[#allocation7 + $0x70] sm:$0xff]
        %v482 = vld [vmem:[#allocation7 + $0x78] sm:$0xff]
        %v483 = vld [vmem:[#allocation7 + $0x80] sm:$0xff]
        %v484 = vld [vmem:[#allocation7 + $0x88] sm:$0xff]
        %v485 = vld [vmem:[#allocation7 + $0x90] sm:$0xff]
        %v486 = vld [vmem:[#allocation7 + $0x98] sm:$0xff]
        %v487 = vld [vmem:[#allocation7 + $0xa0] sm:$0xff]
        %v488 = vld [vmem:[#allocation7 + $0xa8] sm:$0xff]
        %v489 = vld [vmem:[#allocation7 + $0xb0] sm:$0xff]
        %v490 = vld [vmem:[#allocation7 + $0xb8] sm:$0xff]
        %v491 = vld [vmem:[#allocation7 + $0xc0] sm:$0xff]
        %v492 = vld [vmem:[#allocation7 + $0xc8] sm:$0xff]
        %v493 = vld [vmem:[#allocation7 + $0xd0] sm:$0xff]
        %v494 = vld [vmem:[#allocation7 + $0xd8] sm:$0xff]
        %v495 = vld [vmem:[#allocation7 + $0xe0] sm:$0xff]
        %v496 = vld [vmem:[#allocation7 + $0xe8] sm:$0xff]
        %v497 = vld [vmem:[#allocation7 + $0xf0] sm:$0xff]
        %v498 = vld [vmem:[#allocation7 + $0xf8] sm:$0xff]
        %v531 = vunpack.c.l.b16 %v467
        %v532 = vunpack.c.h.b16 %v467
        %v533 = vunpack.c.l.b16 %v468
        %v534 = vunpack.c.h.b16 %v468
        %v535 = vunpack.c.l.b16 %v469
        %v536 = vunpack.c.h.b16 %v469
        %v537 = vunpack.c.l.b16 %v470
        %v538 = vunpack.c.h.b16 %v470
        %v539 = vunpack.c.l.b16 %v471
        %v540 = vunpack.c.h.b16 %v471
        %v541 = vunpack.c.l.b16 %v472
        %v542 = vunpack.c.h.b16 %v472
        %v543 = vunpack.c.l.b16 %v473
        %v544 = vunpack.c.h.b16 %v473
        %v545 = vunpack.c.l.b16 %v474
        %v546 = vunpack.c.h.b16 %v474
        %v547 = vunpack.c.l.b16 %v475
        %v548 = vunpack.c.h.b16 %v475
        %v549 = vunpack.c.l.b16 %v476
        %v550 = vunpack.c.h.b16 %v476
        %v551 = vunpack.c.l.b16 %v477
        %v552 = vunpack.c.h.b16 %v477
        %v553 = vunpack.c.l.b16 %v478
        %v554 = vunpack.c.h.b16 %v478
        %v555 = vunpack.c.l.b16 %v479
        %v556 = vunpack.c.h.b16 %v479
        %v557 = vunpack.c.l.b16 %v480
        %v558 = vunpack.c.h.b16 %v480
        %v559 = vunpack.c.l.b16 %v481
        %v560 = vunpack.c.h.b16 %v481
        %v561 = vunpack.c.l.b16 %v482
        %v562 = vunpack.c.h.b16 %v482
        %v563 = vunpack.c.l.b16 %v483
        %v564 = vunpack.c.h.b16 %v483
        %v565 = vunpack.c.l.b16 %v484
        %v566 = vunpack.c.h.b16 %v484
        %v567 = vunpack.c.l.b16 %v485
        %v568 = vunpack.c.h.b16 %v485
        %v569 = vunpack.c.l.b16 %v486
        %v570 = vunpack.c.h.b16 %v486
        %v571 = vunpack.c.l.b16 %v487
        %v572 = vunpack.c.h.b16 %v487
        %v573 = vunpack.c.l.b16 %v488
        %v574 = vunpack.c.h.b16 %v488
        %v575 = vunpack.c.l.b16 %v489
        %v576 = vunpack.c.h.b16 %v489
        %v577 = vunpack.c.l.b16 %v490
        %v578 = vunpack.c.h.b16 %v490
        %v579 = vunpack.c.l.b16 %v491
        %v580 = vunpack.c.h.b16 %v491
        %v581 = vunpack.c.l.b16 %v492
        %v582 = vunpack.c.h.b16 %v492
        %v583 = vunpack.c.l.b16 %v493
        %v584 = vunpack.c.h.b16 %v493
        %v585 = vunpack.c.l.b16 %v494
        %v586 = vunpack.c.h.b16 %v494
        %v587 = vunpack.c.l.b16 %v495
        %v588 = vunpack.c.h.b16 %v495
        %v589 = vunpack.c.l.b16 %v496
        %v590 = vunpack.c.h.b16 %v496
        %v591 = vunpack.c.l.b16 %v497
        %v592 = vunpack.c.h.b16 %v497
        %v593 = vunpack.c.l.b16 %v498
        %v594 = vunpack.c.h.b16 %v498
        %v595 = vpack.c.b16 %v535, %v531
        %v596 = vpack.c.b16 %v536, %v532
        %v597 = vpack.c.b16 %v537, %v533
        %v598 = vpack.c.b16 %v538, %v534
        %v599 = vpack.c.b16 %v543, %v539
        %v600 = vpack.c.b16 %v544, %v540
        %v601 = vpack.c.b16 %v545, %v541
        %v602 = vpack.c.b16 %v546, %v542
        %v603 = vpack.c.b16 %v551, %v547
        %v604 = vpack.c.b16 %v552, %v548
        %v605 = vpack.c.b16 %v553, %v549
        %v606 = vpack.c.b16 %v554, %v550
        %v607 = vpack.c.b16 %v559, %v555
        %v608 = vpack.c.b16 %v560, %v556
        %v609 = vpack.c.b16 %v561, %v557
        %v610 = vpack.c.b16 %v562, %v558
        %v611 = vpack.c.b16 %v567, %v563
        %v612 = vpack.c.b16 %v568, %v564
        %v613 = vpack.c.b16 %v569, %v565
        %v614 = vpack.c.b16 %v570, %v566
        %v615 = vpack.c.b16 %v575, %v571
        %v616 = vpack.c.b16 %v576, %v572
        %v617 = vpack.c.b16 %v577, %v573
        %v618 = vpack.c.b16 %v578, %v574
        %v619 = vpack.c.b16 %v583, %v579
        %v620 = vpack.c.b16 %v584, %v580
        %v621 = vpack.c.b16 %v585, %v581
        %v622 = vpack.c.b16 %v586, %v582
        %v623 = vpack.c.b16 %v591, %v587
        %v624 = vpack.c.b16 %v592, %v588
        %v625 = vpack.c.b16 %v593, %v589
        %v626 = vpack.c.b16 %v594, %v590
        %659 = vmatprep.subr.bf16.mxu0 %v624
        %660 = vmatpush1.bf16.msra.mxu0 %v623
        %661 = vmatprep.subr.bf16.mxu0 %v620
        %662 = vmatpush1.bf16.msra.mxu0 %v619
        %663 = vmatprep.subr.bf16.mxu0 %v616
        %664 = vmatpush1.bf16.msra.mxu0 %v615
        %665 = vmatprep.subr.bf16.mxu0 %v612
        %666 = vmatpush1.bf16.msra.mxu0 %v611
        %667 = vmatprep.subr.bf16.mxu0 %v608
        %668 = vmatpush1.bf16.msra.mxu0 %v607
        %669 = vmatprep.subr.bf16.mxu0 %v604
        %670 = vmatpush1.bf16.msra.mxu0 %v603
        %671 = vmatprep.subr.bf16.mxu0 %v600
        %672 = vmatpush1.bf16.msra.mxu0 %v599
        %673 = vmatprep.subr.bf16.mxu0 %v596
        %674 = vmatpush1.bf16.msra.mxu0 %v595
        %675 = vmatprep.subr.bf16.mxu0 0
        %676 = vmatpush2.bf16.msra.mxu0 0
        %677 = vmatprep.subr.bf16.mxu0 0
        %678 = vmatpush2.bf16.msra.mxu0 0
        %679 = vmatprep.subr.bf16.mxu0 0
        %680 = vmatpush2.bf16.msra.mxu0 0
        %681 = vmatprep.subr.bf16.mxu0 0
        %682 = vmatpush2.bf16.msra.mxu0 0
        %683 = vmatprep.subr.bf16.mxu0 0
        %684 = vmatpush2.bf16.msra.mxu0 0
        %685 = vmatprep.subr.bf16.mxu0 0
        %686 = vmatpush2.bf16.msra.mxu0 0
        %687 = vmatprep.subr.bf16.mxu0 0
        %688 = vmatpush2.bf16.msra.mxu0 0
        %689 = vmatprep.subr.bf16.mxu0 0
        %690 = vmatpush2.bf16.msra.mxu0 0
        %691 = vmatprep.mubr.bf16.mxu0 0
        %692 = vmatmul.mubr.bf16.gmra.mxu0 %v466
        %v693 = vpop.f32.mrf.mxu0
        %v694 = vadd.f32 0.0, %v693
        %v695 = vpop.f32.mrf.mxu0
        %v696 = vadd.f32 0.0, %v695
        %v697 = vpop.f32.mrf.mxu0
        %v698 = vpop.f32.mrf.mxu0
        %699 = vdwg.mxu0
        %700 = vmatprep.subr.bf16.mxu0 %v626
        %701 = vmatpush1.bf16.msra.mxu0 %v625
        %702 = vmatprep.subr.bf16.mxu0 %v622
        %703 = vmatpush1.bf16.msra.mxu0 %v621
        %704 = vmatprep.subr.bf16.mxu0 %v618
        %705 = vmatpush1.bf16.msra.mxu0 %v617
        %706 = vmatprep.subr.bf16.mxu0 %v614
        %707 = vmatpush1.bf16.msra.mxu0 %v613
        %708 = vmatprep.subr.bf16.mxu0 %v610
        %709 = vmatpush1.bf16.msra.mxu0 %v609
        %710 = vmatprep.subr.bf16.mxu0 %v606
        %711 = vmatpush1.bf16.msra.mxu0 %v605
        %712 = vmatprep.subr.bf16.mxu0 %v602
        %713 = vmatpush1.bf16.msra.mxu0 %v601
        %714 = vmatprep.subr.bf16.mxu0 %v598
        %715 = vmatpush1.bf16.msra.mxu0 %v597
        %716 = vmatprep.subr.bf16.mxu0 0
        %717 = vmatpush2.bf16.msra.mxu0 0
        %718 = vmatprep.subr.bf16.mxu0 0
        %719 = vmatpush2.bf16.msra.mxu0 0
        %720 = vmatprep.subr.bf16.mxu0 0
        %721 = vmatpush2.bf16.msra.mxu0 0
        %722 = vmatprep.subr.bf16.mxu0 0
        %723 = vmatpush2.bf16.msra.mxu0 0
        %724 = vmatprep.subr.bf16.mxu0 0
        %725 = vmatpush2.bf16.msra.mxu0 0
        %726 = vmatprep.subr.bf16.mxu0 0
        %727 = vmatpush2.bf16.msra.mxu0 0
        %728 = vmatprep.subr.bf16.mxu0 0
        %729 = vmatpush2.bf16.msra.mxu0 0
        %730 = vmatprep.subr.bf16.mxu0 0
        %731 = vmatpush2.bf16.msra.mxu0 0
        %732 = vmatprep.mubr.bf16.mxu0 0
        %733 = vmatmul.mubr.bf16.gmra.mxu0 %v466
        %v734 = vpop.f32.mrf.mxu0
        %v735 = vadd.f32 0.0, %v734
        %v736 = vpop.f32.mrf.mxu0
        %v737 = vadd.f32 0.0, %v736
        %v738 = vpop.f32.mrf.mxu0
        %v739 = vpop.f32.mrf.mxu0
        %740 = vdwg.mxu0
        %v741 = vadd.f32 %v462, %v694
        %v742 = vadd.f32 %v463, %v696
        %v743 = vadd.f32 %v464, %v735
        %v744 = vadd.f32 %v465, %v737
        %v745 = vmul.f32 %v741, 0.5
        %v746 = vtanh.pop %v745
        %v747 = vmul.f32 %v746, 0.5
        %v748 = vadd.f32 %v747, 0.5
        %v749 = vmul.f32 %v742, 0.5
        %v750 = vtanh.pop %v749
        %v751 = vmul.f32 %v750, 0.5
        %v752 = vadd.f32 %v751, 0.5
        %v753 = vtanh.pop %v743
        %v754 = vmul.f32 %v744, 0.5
        %v755 = vtanh.pop %v754
        %v756 = vmul.f32 %v755, 0.5
        %v757 = vadd.f32 %v756, 0.5
        %v758 = vmul.f32 %v752, %v456
        %v759 = vmul.f32 %v748, %v753
        %v760 = vadd.f32 %v758, %v759
        %v761 = vtanh.pop %v760
        %v762 = vmul.f32 %v757, %v761
        %v763 = vpack.c.bf16 %v762, %v762
        %v764 = vld [vmem:[#allocation9] sm:$0xff]
        %v765 = vld [vmem:[#allocation9 + $0x8] sm:$0xff]
        %v766 = vld [vmem:[#allocation9 + $0x10] sm:$0xff]
        %v767 = vld [vmem:[#allocation9 + $0x18] sm:$0xff]
        %v768 = vld [vmem:[#allocation9 + $0x20] sm:$0xff]
        %v769 = vld [vmem:[#allocation9 + $0x28] sm:$0xff]
        %v770 = vld [vmem:[#allocation9 + $0x30] sm:$0xff]
        %v771 = vld [vmem:[#allocation9 + $0x38] sm:$0xff]
        %v772 = vld [vmem:[#allocation9 + $0x40] sm:$0xff]
        %v773 = vld [vmem:[#allocation9 + $0x48] sm:$0xff]
        %v774 = vld [vmem:[#allocation9 + $0x50] sm:$0xff]
        %v775 = vld [vmem:[#allocation9 + $0x58] sm:$0xff]
        %v776 = vld [vmem:[#allocation9 + $0x60] sm:$0xff]
        %v777 = vld [vmem:[#allocation9 + $0x68] sm:$0xff]
        %v778 = vld [vmem:[#allocation9 + $0x70] sm:$0xff]
        %v779 = vld [vmem:[#allocation9 + $0x78] sm:$0xff]
        %v780 = vld [vmem:[#allocation9 + $0x80] sm:$0xff]
        %v781 = vld [vmem:[#allocation9 + $0x88] sm:$0xff]
        %v782 = vld [vmem:[#allocation9 + $0x90] sm:$0xff]
        %v783 = vld [vmem:[#allocation9 + $0x98] sm:$0xff]
        %v784 = vld [vmem:[#allocation9 + $0xa0] sm:$0xff]
        %v785 = vld [vmem:[#allocation9 + $0xa8] sm:$0xff]
        %v786 = vld [vmem:[#allocation9 + $0xb0] sm:$0xff]
        %v787 = vld [vmem:[#allocation9 + $0xb8] sm:$0xff]
        %v788 = vld [vmem:[#allocation9 + $0xc0] sm:$0xff]
        %v789 = vld [vmem:[#allocation9 + $0xc8] sm:$0xff]
        %v790 = vld [vmem:[#allocation9 + $0xd0] sm:$0xff]
        %v791 = vld [vmem:[#allocation9 + $0xd8] sm:$0xff]
        %v792 = vld [vmem:[#allocation9 + $0xe0] sm:$0xff]
        %v793 = vld [vmem:[#allocation9 + $0xe8] sm:$0xff]
        %v794 = vld [vmem:[#allocation9 + $0xf0] sm:$0xff]
        %v795 = vld [vmem:[#allocation9 + $0xf8] sm:$0xff]
        %v796 = vld [vmem:[%s5] sm:$0xf]
        %v798 = vlaneseq
        %v799 = vshrl.u32 %v798, 7
        %v800 = vsub.s32 0, %v799
        %v801 = vrot.slane %v796, %v800
        %v802 = vlaneseq
        %v803 = vshrl.u32 %v802, 7
        %v804 = vsub.s32 1, %v803
        %v805 = vrot.slane %v796, %v804
        %v806 = vlaneseq
        %v807 = vshrl.u32 %v806, 7
        %v808 = vsub.s32 2, %v807
        %v809 = vrot.slane %v796, %v808
        %v810 = vlaneseq
        %v811 = vshrl.u32 %v810, 7
        %v812 = vsub.s32 3, %v811
        %v813 = vrot.slane %v796, %v812
        %v850 = vunpack.c.l.b16 %v764
        %v851 = vunpack.c.h.b16 %v764
        %v852 = vunpack.c.l.b16 %v765
        %v853 = vunpack.c.h.b16 %v765
        %v854 = vunpack.c.l.b16 %v766
        %v855 = vunpack.c.h.b16 %v766
        %v856 = vunpack.c.l.b16 %v767
        %v857 = vunpack.c.h.b16 %v767
        %v858 = vunpack.c.l.b16 %v768
        %v859 = vunpack.c.h.b16 %v768
        %v860 = vunpack.c.l.b16 %v769
        %v861 = vunpack.c.h.b16 %v769
        %v862 = vunpack.c.l.b16 %v770
        %v863 = vunpack.c.h.b16 %v770
        %v864 = vunpack.c.l.b16 %v771
        %v865 = vunpack.c.h.b16 %v771
        %v866 = vunpack.c.l.b16 %v772
        %v867 = vunpack.c.h.b16 %v772
        %v868 = vunpack.c.l.b16 %v773
        %v869 = vunpack.c.h.b16 %v773
        %v870 = vunpack.c.l.b16 %v774
        %v871 = vunpack.c.h.b16 %v774
        %v872 = vunpack.c.l.b16 %v775
        %v873 = vunpack.c.h.b16 %v775
        %v874 = vunpack.c.l.b16 %v776
        %v875 = vunpack.c.h.b16 %v776
        %v876 = vunpack.c.l.b16 %v777
        %v877 = vunpack.c.h.b16 %v777
        %v878 = vunpack.c.l.b16 %v778
        %v879 = vunpack.c.h.b16 %v778
        %v880 = vunpack.c.l.b16 %v779
        %v881 = vunpack.c.h.b16 %v779
        %v882 = vunpack.c.l.b16 %v780
        %v883 = vunpack.c.h.b16 %v780
        %v884 = vunpack.c.l.b16 %v781
        %v885 = vunpack.c.h.b16 %v781
        %v886 = vunpack.c.l.b16 %v782
        %v887 = vunpack.c.h.b16 %v782
        %v888 = vunpack.c.l.b16 %v783
        %v889 = vunpack.c.h.b16 %v783
        %v890 = vunpack.c.l.b16 %v784
        %v891 = vunpack.c.h.b16 %v784
        %v892 = vunpack.c.l.b16 %v785
        %v893 = vunpack.c.h.b16 %v785
        %v894 = vunpack.c.l.b16 %v786
        %v895 = vunpack.c.h.b16 %v786
        %v896 = vunpack.c.l.b16 %v787
        %v897 = vunpack.c.h.b16 %v787
        %v898 = vunpack.c.l.b16 %v788
        %v899 = vunpack.c.h.b16 %v788
        %v900 = vunpack.c.l.b16 %v789
        %v901 = vunpack.c.h.b16 %v789
        %v902 = vunpack.c.l.b16 %v790
        %v903 = vunpack.c.h.b16 %v790
        %v904 = vunpack.c.l.b16 %v791
        %v905 = vunpack.c.h.b16 %v791
        %v906 = vunpack.c.l.b16 %v792
        %v907 = vunpack.c.h.b16 %v792
        %v908 = vunpack.c.l.b16 %v793
        %v909 = vunpack.c.h.b16 %v793
        %v910 = vunpack.c.l.b16 %v794
        %v911 = vunpack.c.h.b16 %v794
        %v912 = vunpack.c.l.b16 %v795
        %v913 = vunpack.c.h.b16 %v795
        %v914 = vpack.c.b16 %v854, %v850
        %v915 = vpack.c.b16 %v855, %v851
        %v916 = vpack.c.b16 %v856, %v852
        %v917 = vpack.c.b16 %v857, %v853
        %v918 = vpack.c.b16 %v862, %v858
        %v919 = vpack.c.b16 %v863, %v859
        %v920 = vpack.c.b16 %v864, %v860
        %v921 = vpack.c.b16 %v865, %v861
        %v922 = vpack.c.b16 %v870, %v866
        %v923 = vpack.c.b16 %v871, %v867
        %v924 = vpack.c.b16 %v872, %v868
        %v925 = vpack.c.b16 %v873, %v869
        %v926 = vpack.c.b16 %v878, %v874
        %v927 = vpack.c.b16 %v879, %v875
        %v928 = vpack.c.b16 %v880, %v876
        %v929 = vpack.c.b16 %v881, %v877
        %v930 = vpack.c.b16 %v886, %v882
        %v931 = vpack.c.b16 %v887, %v883
        %v932 = vpack.c.b16 %v888, %v884
        %v933 = vpack.c.b16 %v889, %v885
        %v934 = vpack.c.b16 %v894, %v890
        %v935 = vpack.c.b16 %v895, %v891
        %v936 = vpack.c.b16 %v896, %v892
        %v937 = vpack.c.b16 %v897, %v893
        %v938 = vpack.c.b16 %v902, %v898
        %v939 = vpack.c.b16 %v903, %v899
        %v940 = vpack.c.b16 %v904, %v900
        %v941 = vpack.c.b16 %v905, %v901
        %v942 = vpack.c.b16 %v910, %v906
        %v943 = vpack.c.b16 %v911, %v907
        %v944 = vpack.c.b16 %v912, %v908
        %v945 = vpack.c.b16 %v913, %v909
        %978 = vmatprep.subr.bf16.mxu0 %v943
        %979 = vmatpush1.bf16.msra.mxu0 %v942
        %980 = vmatprep.subr.bf16.mxu0 %v939
        %981 = vmatpush1.bf16.msra.mxu0 %v938
        %982 = vmatprep.subr.bf16.mxu0 %v935
        %983 = vmatpush1.bf16.msra.mxu0 %v934
        %984 = vmatprep.subr.bf16.mxu0 %v931
        %985 = vmatpush1.bf16.msra.mxu0 %v930
        %986 = vmatprep.subr.bf16.mxu0 %v927
        %987 = vmatpush1.bf16.msra.mxu0 %v926
        %988 = vmatprep.subr.bf16.mxu0 %v923
        %989 = vmatpush1.bf16.msra.mxu0 %v922
        %990 = vmatprep.subr.bf16.mxu0 %v919
        %991 = vmatpush1.bf16.msra.mxu0 %v918
        %992 = vmatprep.subr.bf16.mxu0 %v915
        %993 = vmatpush1.bf16.msra.mxu0 %v914
        %994 = vmatprep.subr.bf16.mxu0 0
        %995 = vmatpush2.bf16.msra.mxu0 0
        %996 = vmatprep.subr.bf16.mxu0 0
        %997 = vmatpush2.bf16.msra.mxu0 0
        %998 = vmatprep.subr.bf16.mxu0 0
        %999 = vmatpush2.bf16.msra.mxu0 0
        %1000 = vmatprep.subr.bf16.mxu0 0
        %1001 = vmatpush2.bf16.msra.mxu0 0
        %1002 = vmatprep.subr.bf16.mxu0 0
        %1003 = vmatpush2.bf16.msra.mxu0 0
        %1004 = vmatprep.subr.bf16.mxu0 0
        %1005 = vmatpush2.bf16.msra.mxu0 0
        %1006 = vmatprep.subr.bf16.mxu0 0
        %1007 = vmatpush2.bf16.msra.mxu0 0
        %1008 = vmatprep.subr.bf16.mxu0 0
        %1009 = vmatpush2.bf16.msra.mxu0 0
        %1010 = vmatprep.mubr.bf16.mxu0 0
        %1011 = vmatmul.mubr.bf16.gmra.mxu0 %v763
        %v1012 = vpop.f32.mrf.mxu0
        %v1013 = vadd.f32 %v801, %v1012
        %v1014 = vpop.f32.mrf.mxu0
        %v1015 = vadd.f32 %v805, %v1014
        %v1016 = vpop.f32.mrf.mxu0
        %v1017 = vpop.f32.mrf.mxu0
        %1018 = vdwg.mxu0
        %1019 = vmatprep.subr.bf16.mxu0 %v945
        %1020 = vmatpush1.bf16.msra.mxu0 %v944
        %1021 = vmatprep.subr.bf16.mxu0 %v941
        %1022 = vmatpush1.bf16.msra.mxu0 %v940
        %1023 = vmatprep.subr.bf16.mxu0 %v937
        %1024 = vmatpush1.bf16.msra.mxu0 %v936
        %1025 = vmatprep.subr.bf16.mxu0 %v933
        %1026 = vmatpush1.bf16.msra.mxu0 %v932
        %1027 = vmatprep.subr.bf16.mxu0 %v929
        %1028 = vmatpush1.bf16.msra.mxu0 %v928
        %1029 = vmatprep.subr.bf16.mxu0 %v925
        %1030 = vmatpush1.bf16.msra.mxu0 %v924
        %1031 = vmatprep.subr.bf16.mxu0 %v921
        %1032 = vmatpush1.bf16.msra.mxu0 %v920
        %1033 = vmatprep.subr.bf16.mxu0 %v917
        %1034 = vmatpush1.bf16.msra.mxu0 %v916
        %1035 = vmatprep.subr.bf16.mxu0 0
        %1036 = vmatpush2.bf16.msra.mxu0 0
        %1037 = vmatprep.subr.bf16.mxu0 0
        %1038 = vmatpush2.bf16.msra.mxu0 0
        %1039 = vmatprep.subr.bf16.mxu0 0
        %1040 = vmatpush2.bf16.msra.mxu0 0
        %1041 = vmatprep.subr.bf16.mxu0 0
        %1042 = vmatpush2.bf16.msra.mxu0 0
        %1043 = vmatprep.subr.bf16.mxu0 0
        %1044 = vmatpush2.bf16.msra.mxu0 0
        %1045 = vmatprep.subr.bf16.mxu0 0
        %1046 = vmatpush2.bf16.msra.mxu0 0
        %1047 = vmatprep.subr.bf16.mxu0 0
        %1048 = vmatpush2.bf16.msra.mxu0 0
        %1049 = vmatprep.subr.bf16.mxu0 0
        %1050 = vmatpush2.bf16.msra.mxu0 0
        %1051 = vmatprep.mubr.bf16.mxu0 0
        %1052 = vmatmul.mubr.bf16.gmra.mxu0 %v763
        %v1053 = vpop.f32.mrf.mxu0
        %v1054 = vadd.f32 %v809, %v1053
        %v1055 = vpop.f32.mrf.mxu0
        %v1056 = vadd.f32 %v813, %v1055
        %v1057 = vpop.f32.mrf.mxu0
        %v1058 = vpop.f32.mrf.mxu0
        %1059 = vdwg.mxu0
        %v1060 = vpack.c.bf16 %v457, %v457
        %v1061 = vld [vmem:[#allocation11] sm:$0xff]
        %v1062 = vld [vmem:[#allocation11 + $0x8] sm:$0xff]
        %v1063 = vld [vmem:[#allocation11 + $0x10] sm:$0xff]
        %v1064 = vld [vmem:[#allocation11 + $0x18] sm:$0xff]
        %v1065 = vld [vmem:[#allocation11 + $0x20] sm:$0xff]
        %v1066 = vld [vmem:[#allocation11 + $0x28] sm:$0xff]
        %v1067 = vld [vmem:[#allocation11 + $0x30] sm:$0xff]
        %v1068 = vld [vmem:[#allocation11 + $0x38] sm:$0xff]
        %v1069 = vld [vmem:[#allocation11 + $0x40] sm:$0xff]
        %v1070 = vld [vmem:[#allocation11 + $0x48] sm:$0xff]
        %v1071 = vld [vmem:[#allocation11 + $0x50] sm:$0xff]
        %v1072 = vld [vmem:[#allocation11 + $0x58] sm:$0xff]
        %v1073 = vld [vmem:[#allocation11 + $0x60] sm:$0xff]
        %v1074 = vld [vmem:[#allocation11 + $0x68] sm:$0xff]
        %v1075 = vld [vmem:[#allocation11 + $0x70] sm:$0xff]
        %v1076 = vld [vmem:[#allocation11 + $0x78] sm:$0xff]
        %v1077 = vld [vmem:[#allocation11 + $0x80] sm:$0xff]
        %v1078 = vld [vmem:[#allocation11 + $0x88] sm:$0xff]
        %v1079 = vld [vmem:[#allocation11 + $0x90] sm:$0xff]
        %v1080 = vld [vmem:[#allocation11 + $0x98] sm:$0xff]
        %v1081 = vld [vmem:[#allocation11 + $0xa0] sm:$0xff]
        %v1082 = vld [vmem:[#allocation11 + $0xa8] sm:$0xff]
        %v1083 = vld [vmem:[#allocation11 + $0xb0] sm:$0xff]
        %v1084 = vld [vmem:[#allocation11 + $0xb8] sm:$0xff]
        %v1085 = vld [vmem:[#allocation11 + $0xc0] sm:$0xff]
        %v1086 = vld [vmem:[#allocation11 + $0xc8] sm:$0xff]
        %v1087 = vld [vmem:[#allocation11 + $0xd0] sm:$0xff]
        %v1088 = vld [vmem:[#allocation11 + $0xd8] sm:$0xff]
        %v1089 = vld [vmem:[#allocation11 + $0xe0] sm:$0xff]
        %v1090 = vld [vmem:[#allocation11 + $0xe8] sm:$0xff]
        %v1091 = vld [vmem:[#allocation11 + $0xf0] sm:$0xff]
        %v1092 = vld [vmem:[#allocation11 + $0xf8] sm:$0xff]
        %v1125 = vunpack.c.l.b16 %v1061
        %v1126 = vunpack.c.h.b16 %v1061
        %v1127 = vunpack.c.l.b16 %v1062
        %v1128 = vunpack.c.h.b16 %v1062
        %v1129 = vunpack.c.l.b16 %v1063
        %v1130 = vunpack.c.h.b16 %v1063
        %v1131 = vunpack.c.l.b16 %v1064
        %v1132 = vunpack.c.h.b16 %v1064
        %v1133 = vunpack.c.l.b16 %v1065
        %v1134 = vunpack.c.h.b16 %v1065
        %v1135 = vunpack.c.l.b16 %v1066
        %v1136 = vunpack.c.h.b16 %v1066
        %v1137 = vunpack.c.l.b16 %v1067
        %v1138 = vunpack.c.h.b16 %v1067
        %v1139 = vunpack.c.l.b16 %v1068
        %v1140 = vunpack.c.h.b16 %v1068
        %v1141 = vunpack.c.l.b16 %v1069
        %v1142 = vunpack.c.h.b16 %v1069
        %v1143 = vunpack.c.l.b16 %v1070
        %v1144 = vunpack.c.h.b16 %v1070
        %v1145 = vunpack.c.l.b16 %v1071
        %v1146 = vunpack.c.h.b16 %v1071
        %v1147 = vunpack.c.l.b16 %v1072
        %v1148 = vunpack.c.h.b16 %v1072
        %v1149 = vunpack.c.l.b16 %v1073
        %v1150 = vunpack.c.h.b16 %v1073
        %v1151 = vunpack.c.l.b16 %v1074
        %v1152 = vunpack.c.h.b16 %v1074
        %v1153 = vunpack.c.l.b16 %v1075
        %v1154 = vunpack.c.h.b16 %v1075
        %v1155 = vunpack.c.l.b16 %v1076
        %v1156 = vunpack.c.h.b16 %v1076
        %v1157 = vunpack.c.l.b16 %v1077
        %v1158 = vunpack.c.h.b16 %v1077
        %v1159 = vunpack.c.l.b16 %v1078
        %v1160 = vunpack.c.h.b16 %v1078
        %v1161 = vunpack.c.l.b16 %v1079
        %v1162 = vunpack.c.h.b16 %v1079
        %v1163 = vunpack.c.l.b16 %v1080
        %v1164 = vunpack.c.h.b16 %v1080
        %v1165 = vunpack.c.l.b16 %v1081
        %v1166 = vunpack.c.h.b16 %v1081
        %v1167 = vunpack.c.l.b16 %v1082
        %v1168 = vunpack.c.h.b16 %v1082
        %v1169 = vunpack.c.l.b16 %v1083
        %v1170 = vunpack.c.h.b16 %v1083
        %v1171 = vunpack.c.l.b16 %v1084
        %v1172 = vunpack.c.h.b16 %v1084
        %v1173 = vunpack.c.l.b16 %v1085
        %v1174 = vunpack.c.h.b16 %v1085
        %v1175 = vunpack.c.l.b16 %v1086
        %v1176 = vunpack.c.h.b16 %v1086
        %v1177 = vunpack.c.l.b16 %v1087
        %v1178 = vunpack.c.h.b16 %v1087
        %v1179 = vunpack.c.l.b16 %v1088
        %v1180 = vunpack.c.h.b16 %v1088
        %v1181 = vunpack.c.l.b16 %v1089
        %v1182 = vunpack.c.h.b16 %v1089
        %v1183 = vunpack.c.l.b16 %v1090
        %v1184 = vunpack.c.h.b16 %v1090
        %v1185 = vunpack.c.l.b16 %v1091
        %v1186 = vunpack.c.h.b16 %v1091
        %v1187 = vunpack.c.l.b16 %v1092
        %v1188 = vunpack.c.h.b16 %v1092
        %v1189 = vpack.c.b16 %v1129, %v1125
        %v1190 = vpack.c.b16 %v1130, %v1126
        %v1191 = vpack.c.b16 %v1131, %v1127
        %v1192 = vpack.c.b16 %v1132, %v1128
        %v1193 = vpack.c.b16 %v1137, %v1133
        %v1194 = vpack.c.b16 %v1138, %v1134
        %v1195 = vpack.c.b16 %v1139, %v1135
        %v1196 = vpack.c.b16 %v1140, %v1136
        %v1197 = vpack.c.b16 %v1145, %v1141
        %v1198 = vpack.c.b16 %v1146, %v1142
        %v1199 = vpack.c.b16 %v1147, %v1143
        %v1200 = vpack.c.b16 %v1148, %v1144
        %v1201 = vpack.c.b16 %v1153, %v1149
        %v1202 = vpack.c.b16 %v1154, %v1150
        %v1203 = vpack.c.b16 %v1155, %v1151
        %v1204 = vpack.c.b16 %v1156, %v1152
        %v1205 = vpack.c.b16 %v1161, %v1157
        %v1206 = vpack.c.b16 %v1162, %v1158
        %v1207 = vpack.c.b16 %v1163, %v1159
        %v1208 = vpack.c.b16 %v1164, %v1160
        %v1209 = vpack.c.b16 %v1169, %v1165
        %v1210 = vpack.c.b16 %v1170, %v1166
        %v1211 = vpack.c.b16 %v1171, %v1167
        %v1212 = vpack.c.b16 %v1172, %v1168
        %v1213 = vpack.c.b16 %v1177, %v1173
        %v1214 = vpack.c.b16 %v1178, %v1174
        %v1215 = vpack.c.b16 %v1179, %v1175
        %v1216 = vpack.c.b16 %v1180, %v1176
        %v1217 = vpack.c.b16 %v1185, %v1181
        %v1218 = vpack.c.b16 %v1186, %v1182
        %v1219 = vpack.c.b16 %v1187, %v1183
        %v1220 = vpack.c.b16 %v1188, %v1184
        %1253 = vmatprep.subr.bf16.mxu0 %v1218
        %1254 = vmatpush1.bf16.msra.mxu0 %v1217
        %1255 = vmatprep.subr.bf16.mxu0 %v1214
        %1256 = vmatpush1.bf16.msra.mxu0 %v1213
        %1257 = vmatprep.subr.bf16.mxu0 %v1210
        %1258 = vmatpush1.bf16.msra.mxu0 %v1209
        %1259 = vmatprep.subr.bf16.mxu0 %v1206
        %1260 = vmatpush1.bf16.msra.mxu0 %v1205
        %1261 = vmatprep.subr.bf16.mxu0 %v1202
        %1262 = vmatpush1.bf16.msra.mxu0 %v1201
        %1263 = vmatprep.subr.bf16.mxu0 %v1198
        %1264 = vmatpush1.bf16.msra.mxu0 %v1197
        %1265 = vmatprep.subr.bf16.mxu0 %v1194
        %1266 = vmatpush1.bf16.msra.mxu0 %v1193
        %1267 = vmatprep.subr.bf16.mxu0 %v1190
        %1268 = vmatpush1.bf16.msra.mxu0 %v1189
        %1269 = vmatprep.subr.bf16.mxu0 0
        %1270 = vmatpush2.bf16.msra.mxu0 0
        %1271 = vmatprep.subr.bf16.mxu0 0
        %1272 = vmatpush2.bf16.msra.mxu0 0
        %1273 = vmatprep.subr.bf16.mxu0 0
        %1274 = vmatpush2.bf16.msra.mxu0 0
        %1275 = vmatprep.subr.bf16.mxu0 0
        %1276 = vmatpush2.bf16.msra.mxu0 0
        %1277 = vmatprep.subr.bf16.mxu0 0
        %1278 = vmatpush2.bf16.msra.mxu0 0
        %1279 = vmatprep.subr.bf16.mxu0 0
        %1280 = vmatpush2.bf16.msra.mxu0 0
        %1281 = vmatprep.subr.bf16.mxu0 0
        %1282 = vmatpush2.bf16.msra.mxu0 0
        %1283 = vmatprep.subr.bf16.mxu0 0
        %1284 = vmatpush2.bf16.msra.mxu0 0
        %1285 = vmatprep.mubr.bf16.mxu0 0
        %1286 = vmatmul.mubr.bf16.gmra.mxu0 %v1060
        %v1287 = vpop.f32.mrf.mxu0
        %v1288 = vadd.f32 0.0, %v1287
        %v1289 = vpop.f32.mrf.mxu0
        %v1290 = vadd.f32 0.0, %v1289
        %v1291 = vpop.f32.mrf.mxu0
        %v1292 = vpop.f32.mrf.mxu0
        %1293 = vdwg.mxu0
        %1294 = vmatprep.subr.bf16.mxu0 %v1220
        %1295 = vmatpush1.bf16.msra.mxu0 %v1219
        %1296 = vmatprep.subr.bf16.mxu0 %v1216
        %1297 = vmatpush1.bf16.msra.mxu0 %v1215
        %1298 = vmatprep.subr.bf16.mxu0 %v1212
        %1299 = vmatpush1.bf16.msra.mxu0 %v1211
        %1300 = vmatprep.subr.bf16.mxu0 %v1208
        %1301 = vmatpush1.bf16.msra.mxu0 %v1207
        %1302 = vmatprep.subr.bf16.mxu0 %v1204
        %1303 = vmatpush1.bf16.msra.mxu0 %v1203
        %1304 = vmatprep.subr.bf16.mxu0 %v1200
        %1305 = vmatpush1.bf16.msra.mxu0 %v1199
        %1306 = vmatprep.subr.bf16.mxu0 %v1196
        %1307 = vmatpush1.bf16.msra.mxu0 %v1195
        %1308 = vmatprep.subr.bf16.mxu0 %v1192
        %1309 = vmatpush1.bf16.msra.mxu0 %v1191
        %1310 = vmatprep.subr.bf16.mxu0 0
        %1311 = vmatpush2.bf16.msra.mxu0 0
        %1312 = vmatprep.subr.bf16.mxu0 0
        %1313 = vmatpush2.bf16.msra.mxu0 0
        %1314 = vmatprep.subr.bf16.mxu0 0
        %1315 = vmatpush2.bf16.msra.mxu0 0
        %1316 = vmatprep.subr.bf16.mxu0 0
        %1317 = vmatpush2.bf16.msra.mxu0 0
        %1318 = vmatprep.subr.bf16.mxu0 0
        %1319 = vmatpush2.bf16.msra.mxu0 0
        %1320 = vmatprep.subr.bf16.mxu0 0
        %1321 = vmatpush2.bf16.msra.mxu0 0
        %1322 = vmatprep.subr.bf16.mxu0 0
        %1323 = vmatpush2.bf16.msra.mxu0 0
        %1324 = vmatprep.subr.bf16.mxu0 0
        %1325 = vmatpush2.bf16.msra.mxu0 0
        %1326 = vmatprep.mubr.bf16.mxu0 0
        %1327 = vmatmul.mubr.bf16.gmra.mxu0 %v1060
        %v1328 = vpop.f32.mrf.mxu0
        %v1329 = vadd.f32 0.0, %v1328
        %v1330 = vpop.f32.mrf.mxu0
        %v1331 = vadd.f32 0.0, %v1330
        %v1332 = vpop.f32.mrf.mxu0
        %v1333 = vpop.f32.mrf.mxu0
        %1334 = vdwg.mxu0
        %v1335 = vadd.f32 %v1013, %v1288
        %v1336 = vadd.f32 %v1015, %v1290
        %v1337 = vadd.f32 %v1054, %v1329
        %v1338 = vadd.f32 %v1056, %v1331
        %v1339 = vmul.f32 %v1335, 0.5
        %v1340 = vtanh.pop %v1339
        %v1341 = vmul.f32 %v1340, 0.5
        %v1342 = vadd.f32 %v1341, 0.5
        %v1343 = vmul.f32 %v1336, 0.5
        %v1344 = vtanh.pop %v1343
        %v1345 = vmul.f32 %v1344, 0.5
        %v1346 = vadd.f32 %v1345, 0.5
        %v1347 = vtanh.pop %v1337
        %v1348 = vmul.f32 %v1338, 0.5
        %v1349 = vtanh.pop %v1348
        %v1350 = vmul.f32 %v1349, 0.5
        %v1351 = vadd.f32 %v1350, 0.5
        %v1352 = vmul.f32 %v1346, %v458
        %v1353 = vmul.f32 %v1342, %v1347
        %v1354 = vadd.f32 %v1352, %v1353
        %v1355 = vtanh.pop %v1354
        %v1356 = vmul.f32 %v1351, %v1355
        %s1357 = smul.u32 1, 4
        %s1358 = smul.addr %s1357, 8
        %s1359 = scalar_lea.vmem [#allocation2], %s1358
        %v1360 = vld [vmem:[%s1359] sm:$0xff]
        %v1361 = vld [vmem:[%s1359 + $0x8] sm:$0xff]
        %v1362 = vld [vmem:[%s1359 + $0x10] sm:$0xff]
        %v1363 = vld [vmem:[%s1359 + $0x18] sm:$0xff]
        %1364 = vmatprep.subr.bf16.mxu0 %v624
        %1365 = vmatpush1.bf16.msra.mxu0 %v623
        %1366 = vmatprep.subr.bf16.mxu0 %v620
        %1367 = vmatpush1.bf16.msra.mxu0 %v619
        %1368 = vmatprep.subr.bf16.mxu0 %v616
        %1369 = vmatpush1.bf16.msra.mxu0 %v615
        %1370 = vmatprep.subr.bf16.mxu0 %v612
        %1371 = vmatpush1.bf16.msra.mxu0 %v611
        %1372 = vmatprep.subr.bf16.mxu0 %v608
        %1373 = vmatpush1.bf16.msra.mxu0 %v607
        %1374 = vmatprep.subr.bf16.mxu0 %v604
        %1375 = vmatpush1.bf16.msra.mxu0 %v603
        %1376 = vmatprep.subr.bf16.mxu0 %v600
        %1377 = vmatpush1.bf16.msra.mxu0 %v599
        %1378 = vmatprep.subr.bf16.mxu0 %v596
        %1379 = vmatpush1.bf16.msra.mxu0 %v595
        %1380 = vmatprep.subr.bf16.mxu0 0
        %1381 = vmatpush2.bf16.msra.mxu0 0
        %1382 = vmatprep.subr.bf16.mxu0 0
        %1383 = vmatpush2.bf16.msra.mxu0 0
        %1384 = vmatprep.subr.bf16.mxu0 0
        %1385 = vmatpush2.bf16.msra.mxu0 0
        %1386 = vmatprep.subr.bf16.mxu0 0
        %1387 = vmatpush2.bf16.msra.mxu0 0
        %1388 = vmatprep.subr.bf16.mxu0 0
        %1389 = vmatpush2.bf16.msra.mxu0 0
        %1390 = vmatprep.subr.bf16.mxu0 0
        %1391 = vmatpush2.bf16.msra.mxu0 0
        %1392 = vmatprep.subr.bf16.mxu0 0
        %1393 = vmatpush2.bf16.msra.mxu0 0
        %1394 = vmatprep.subr.bf16.mxu0 0
        %1395 = vmatpush2.bf16.msra.mxu0 0
        %1396 = vmatprep.mubr.bf16.mxu0 0
        %1397 = vmatmul.mubr.bf16.gmra.mxu0 %v763
        %v1398 = vpop.f32.mrf.mxu0
        %v1399 = vadd.f32 0.0, %v1398
        %v1400 = vpop.f32.mrf.mxu0
        %v1401 = vadd.f32 0.0, %v1400
        %v1402 = vpop.f32.mrf.mxu0
        %v1403 = vpop.f32.mrf.mxu0
        %1404 = vdwg.mxu0
        %1405 = vmatprep.subr.bf16.mxu0 %v626
        %1406 = vmatpush1.bf16.msra.mxu0 %v625
        %1407 = vmatprep.subr.bf16.mxu0 %v622
        %1408 = vmatpush1.bf16.msra.mxu0 %v621
        %1409 = vmatprep.subr.bf16.mxu0 %v618
        %1410 = vmatpush1.bf16.msra.mxu0 %v617
        %1411 = vmatprep.subr.bf16.mxu0 %v614
        %1412 = vmatpush1.bf16.msra.mxu0 %v613
        %1413 = vmatprep.subr.bf16.mxu0 %v610
        %1414 = vmatpush1.bf16.msra.mxu0 %v609
        %1415 = vmatprep.subr.bf16.mxu0 %v606
        %1416 = vmatpush1.bf16.msra.mxu0 %v605
        %1417 = vmatprep.subr.bf16.mxu0 %v602
        %1418 = vmatpush1.bf16.msra.mxu0 %v601
        %1419 = vmatprep.subr.bf16.mxu0 %v598
        %1420 = vmatpush1.bf16.msra.mxu0 %v597
        %1421 = vmatprep.subr.bf16.mxu0 0
        %1422 = vmatpush2.bf16.msra.mxu0 0
        %1423 = vmatprep.subr.bf16.mxu0 0
        %1424 = vmatpush2.bf16.msra.mxu0 0
        %1425 = vmatprep.subr.bf16.mxu0 0
        %1426 = vmatpush2.bf16.msra.mxu0 0
        %1427 = vmatprep.subr.bf16.mxu0 0
        %1428 = vmatpush2.bf16.msra.mxu0 0
        %1429 = vmatprep.subr.bf16.mxu0 0
        %1430 = vmatpush2.bf16.msra.mxu0 0
        %1431 = vmatprep.subr.bf16.mxu0 0
        %1432 = vmatpush2.bf16.msra.mxu0 0
        %1433 = vmatprep.subr.bf16.mxu0 0
        %1434 = vmatpush2.bf16.msra.mxu0 0
        %1435 = vmatprep.subr.bf16.mxu0 0
        %1436 = vmatpush2.bf16.msra.mxu0 0
        %1437 = vmatprep.mubr.bf16.mxu0 0
        %1438 = vmatmul.mubr.bf16.gmra.mxu0 %v763
        %v1439 = vpop.f32.mrf.mxu0
        %v1440 = vadd.f32 0.0, %v1439
        %v1441 = vpop.f32.mrf.mxu0
        %v1442 = vadd.f32 0.0, %v1441
        %v1443 = vpop.f32.mrf.mxu0
        %v1444 = vpop.f32.mrf.mxu0
        %1445 = vdwg.mxu0
        %v1446 = vadd.f32 %v1360, %v1399
        %v1447 = vadd.f32 %v1361, %v1401
        %v1448 = vadd.f32 %v1362, %v1440
        %v1449 = vadd.f32 %v1363, %v1442
        %v1450 = vmul.f32 %v1446, 0.5
        %v1451 = vtanh.pop %v1450
        %v1452 = vmul.f32 %v1451, 0.5
        %v1453 = vadd.f32 %v1452, 0.5
        %v1454 = vmul.f32 %v1447, 0.5
        %v1455 = vtanh.pop %v1454
        %v1456 = vmul.f32 %v1455, 0.5
        %v1457 = vadd.f32 %v1456, 0.5
        %v1458 = vtanh.pop %v1448
        %v1459 = vmul.f32 %v1449, 0.5
        %v1460 = vtanh.pop %v1459
        %v1461 = vmul.f32 %v1460, 0.5
        %v1462 = vadd.f32 %v1461, 0.5
        %v1463 = vmul.f32 %v1457, %v760
        %v1464 = vmul.f32 %v1453, %v1458
        %v1465 = vadd.f32 %v1463, %v1464
        %v1466 = vtanh.pop %v1465
        %v1467 = vmul.f32 %v1462, %v1466
        %v1468 = vpack.c.bf16 %v1467, %v1467
        %1469 = vmatprep.subr.bf16.mxu0 %v943
        %1470 = vmatpush1.bf16.msra.mxu0 %v942
        %1471 = vmatprep.subr.bf16.mxu0 %v939
        %1472 = vmatpush1.bf16.msra.mxu0 %v938
        %1473 = vmatprep.subr.bf16.mxu0 %v935
        %1474 = vmatpush1.bf16.msra.mxu0 %v934
        %1475 = vmatprep.subr.bf16.mxu0 %v931
        %1476 = vmatpush1.bf16.msra.mxu0 %v930
        %1477 = vmatprep.subr.bf16.mxu0 %v927
        %1478 = vmatpush1.bf16.msra.mxu0 %v926
        %1479 = vmatprep.subr.bf16.mxu0 %v923
        %1480 = vmatpush1.bf16.msra.mxu0 %v922
        %1481 = vmatprep.subr.bf16.mxu0 %v919
        %1482 = vmatpush1.bf16.msra.mxu0 %v918
        %1483 = vmatprep.subr.bf16.mxu0 %v915
        %1484 = vmatpush1.bf16.msra.mxu0 %v914
        %1485 = vmatprep.subr.bf16.mxu0 0
        %1486 = vmatpush2.bf16.msra.mxu0 0
        %1487 = vmatprep.subr.bf16.mxu0 0
        %1488 = vmatpush2.bf16.msra.mxu0 0
        %1489 = vmatprep.subr.bf16.mxu0 0
        %1490 = vmatpush2.bf16.msra.mxu0 0
        %1491 = vmatprep.subr.bf16.mxu0 0
        %1492 = vmatpush2.bf16.msra.mxu0 0
        %1493 = vmatprep.subr.bf16.mxu0 0
        %1494 = vmatpush2.bf16.msra.mxu0 0
        %1495 = vmatprep.subr.bf16.mxu0 0
        %1496 = vmatpush2.bf16.msra.mxu0 0
        %1497 = vmatprep.subr.bf16.mxu0 0
        %1498 = vmatpush2.bf16.msra.mxu0 0
        %1499 = vmatprep.subr.bf16.mxu0 0
        %1500 = vmatpush2.bf16.msra.mxu0 0
        %1501 = vmatprep.mubr.bf16.mxu0 0
        %1502 = vmatmul.mubr.bf16.gmra.mxu0 %v1468
        %v1503 = vpop.f32.mrf.mxu0
        %v1504 = vadd.f32 %v801, %v1503
        %v1505 = vpop.f32.mrf.mxu0
        %v1506 = vadd.f32 %v805, %v1505
        %v1507 = vpop.f32.mrf.mxu0
        %v1508 = vpop.f32.mrf.mxu0
        %1509 = vdwg.mxu0
        %1510 = vmatprep.subr.bf16.mxu0 %v945
        %1511 = vmatpush1.bf16.msra.mxu0 %v944
        %1512 = vmatprep.subr.bf16.mxu0 %v941
        %1513 = vmatpush1.bf16.msra.mxu0 %v940
        %1514 = vmatprep.subr.bf16.mxu0 %v937
        %1515 = vmatpush1.bf16.msra.mxu0 %v936
        %1516 = vmatprep.subr.bf16.mxu0 %v933
        %1517 = vmatpush1.bf16.msra.mxu0 %v932
        %1518 = vmatprep.subr.bf16.mxu0 %v929
        %1519 = vmatpush1.bf16.msra.mxu0 %v928
        %1520 = vmatprep.subr.bf16.mxu0 %v925
        %1521 = vmatpush1.bf16.msra.mxu0 %v924
        %1522 = vmatprep.subr.bf16.mxu0 %v921
        %1523 = vmatpush1.bf16.msra.mxu0 %v920
        %1524 = vmatprep.subr.bf16.mxu0 %v917
        %1525 = vmatpush1.bf16.msra.mxu0 %v916
        %1526 = vmatprep.subr.bf16.mxu0 0
        %1527 = vmatpush2.bf16.msra.mxu0 0
        %1528 = vmatprep.subr.bf16.mxu0 0
        %1529 = vmatpush2.bf16.msra.mxu0 0
        %1530 = vmatprep.subr.bf16.mxu0 0
        %1531 = vmatpush2.bf16.msra.mxu0 0
        %1532 = vmatprep.subr.bf16.mxu0 0
        %1533 = vmatpush2.bf16.msra.mxu0 0
        %1534 = vmatprep.subr.bf16.mxu0 0
        %1535 = vmatpush2.bf16.msra.mxu0 0
        %1536 = vmatprep.subr.bf16.mxu0 0
        %1537 = vmatpush2.bf16.msra.mxu0 0
        %1538 = vmatprep.subr.bf16.mxu0 0
        %1539 = vmatpush2.bf16.msra.mxu0 0
        %1540 = vmatprep.subr.bf16.mxu0 0
        %1541 = vmatpush2.bf16.msra.mxu0 0
        %1542 = vmatprep.mubr.bf16.mxu0 0
        %1543 = vmatmul.mubr.bf16.gmra.mxu0 %v1468
        %v1544 = vpop.f32.mrf.mxu0
        %v1545 = vadd.f32 %v809, %v1544
        %v1546 = vpop.f32.mrf.mxu0
        %v1547 = vadd.f32 %v813, %v1546
        %v1548 = vpop.f32.mrf.mxu0
        %v1549 = vpop.f32.mrf.mxu0
        %1550 = vdwg.mxu0
        %v1551 = vpack.c.bf16 %v1356, %v1356
        %1552 = vmatprep.subr.bf16.mxu0 %v1218
        %1553 = vmatpush1.bf16.msra.mxu0 %v1217
        %1554 = vmatprep.subr.bf16.mxu0 %v1214
        %1555 = vmatpush1.bf16.msra.mxu0 %v1213
        %1556 = vmatprep.subr.bf16.mxu0 %v1210
        %1557 = vmatpush1.bf16.msra.mxu0 %v1209
        %1558 = vmatprep.subr.bf16.mxu0 %v1206
        %1559 = vmatpush1.bf16.msra.mxu0 %v1205
        %1560 = vmatprep.subr.bf16.mxu0 %v1202
        %1561 = vmatpush1.bf16.msra.mxu0 %v1201
        %1562 = vmatprep.subr.bf16.mxu0 %v1198
        %1563 = vmatpush1.bf16.msra.mxu0 %v1197
        %1564 = vmatprep.subr.bf16.mxu0 %v1194
        %1565 = vmatpush1.bf16.msra.mxu0 %v1193
        %1566 = vmatprep.subr.bf16.mxu0 %v1190
        %1567 = vmatpush1.bf16.msra.mxu0 %v1189
        %1568 = vmatprep.subr.bf16.mxu0 0
        %1569 = vmatpush2.bf16.msra.mxu0 0
        %1570 = vmatprep.subr.bf16.mxu0 0
        %1571 = vmatpush2.bf16.msra.mxu0 0
        %1572 = vmatprep.subr.bf16.mxu0 0
        %1573 = vmatpush2.bf16.msra.mxu0 0
        %1574 = vmatprep.subr.bf16.mxu0 0
        %1575 = vmatpush2.bf16.msra.mxu0 0
        %1576 = vmatprep.subr.bf16.mxu0 0
        %1577 = vmatpush2.bf16.msra.mxu0 0
        %1578 = vmatprep.subr.bf16.mxu0 0
        %1579 = vmatpush2.bf16.msra.mxu0 0
        %1580 = vmatprep.subr.bf16.mxu0 0
        %1581 = vmatpush2.bf16.msra.mxu0 0
        %1582 = vmatprep.subr.bf16.mxu0 0
        %1583 = vmatpush2.bf16.msra.mxu0 0
        %1584 = vmatprep.mubr.bf16.mxu0 0
        %1585 = vmatmul.mubr.bf16.gmra.mxu0 %v1551
        %v1586 = vpop.f32.mrf.mxu0
        %v1587 = vadd.f32 0.0, %v1586
        %v1588 = vpop.f32.mrf.mxu0
        %v1589 = vadd.f32 0.0, %v1588
        %v1590 = vpop.f32.mrf.mxu0
        %v1591 = vpop.f32.mrf.mxu0
        %1592 = vdwg.mxu0
        %1593 = vmatprep.subr.bf16.mxu0 %v1220
        %1594 = vmatpush1.bf16.msra.mxu0 %v1219
        %1595 = vmatprep.subr.bf16.mxu0 %v1216
        %1596 = vmatpush1.bf16.msra.mxu0 %v1215
        %1597 = vmatprep.subr.bf16.mxu0 %v1212
        %1598 = vmatpush1.bf16.msra.mxu0 %v1211
        %1599 = vmatprep.subr.bf16.mxu0 %v1208
        %1600 = vmatpush1.bf16.msra.mxu0 %v1207
        %1601 = vmatprep.subr.bf16.mxu0 %v1204
        %1602 = vmatpush1.bf16.msra.mxu0 %v1203
        %1603 = vmatprep.subr.bf16.mxu0 %v1200
        %1604 = vmatpush1.bf16.msra.mxu0 %v1199
        %1605 = vmatprep.subr.bf16.mxu0 %v1196
        %1606 = vmatpush1.bf16.msra.mxu0 %v1195
        %1607 = vmatprep.subr.bf16.mxu0 %v1192
        %1608 = vmatpush1.bf16.msra.mxu0 %v1191
        %1609 = vmatprep.subr.bf16.mxu0 0
        %1610 = vmatpush2.bf16.msra.mxu0 0
        %1611 = vmatprep.subr.bf16.mxu0 0
        %1612 = vmatpush2.bf16.msra.mxu0 0
        %1613 = vmatprep.subr.bf16.mxu0 0
        %1614 = vmatpush2.bf16.msra.mxu0 0
        %1615 = vmatprep.subr.bf16.mxu0 0
        %1616 = vmatpush2.bf16.msra.mxu0 0
        %1617 = vmatprep.subr.bf16.mxu0 0
        %1618 = vmatpush2.bf16.msra.mxu0 0
        %1619 = vmatprep.subr.bf16.mxu0 0
        %1620 = vmatpush2.bf16.msra.mxu0 0
        %1621 = vmatprep.subr.bf16.mxu0 0
        %1622 = vmatpush2.bf16.msra.mxu0 0
        %1623 = vmatprep.subr.bf16.mxu0 0
        %1624 = vmatpush2.bf16.msra.mxu0 0
        %1625 = vmatprep.mubr.bf16.mxu0 0
        %1626 = vmatmul.mubr.bf16.gmra.mxu0 %v1551
        %v1627 = vpop.f32.mrf.mxu0
        %v1628 = vadd.f32 0.0, %v1627
        %v1629 = vpop.f32.mrf.mxu0
        %v1630 = vadd.f32 0.0, %v1629
        %v1631 = vpop.f32.mrf.mxu0
        %v1632 = vpop.f32.mrf.mxu0
        %1633 = vdwg.mxu0
        %v1634 = vadd.f32 %v1504, %v1587
        %v1635 = vadd.f32 %v1506, %v1589
        %v1636 = vadd.f32 %v1545, %v1628
        %v1637 = vadd.f32 %v1547, %v1630
        %v1638 = vmul.f32 %v1634, 0.5
        %v1639 = vtanh.pop %v1638
        %v1640 = vmul.f32 %v1639, 0.5
        %v1641 = vadd.f32 %v1640, 0.5
        %v1642 = vmul.f32 %v1635, 0.5
        %v1643 = vtanh.pop %v1642
        %v1644 = vmul.f32 %v1643, 0.5
        %v1645 = vadd.f32 %v1644, 0.5
        %v1646 = vtanh.pop %v1636
        %v1647 = vmul.f32 %v1637, 0.5
        %v1648 = vtanh.pop %v1647
        %v1649 = vmul.f32 %v1648, 0.5
        %v1650 = vadd.f32 %v1649, 0.5
        %v1651 = vmul.f32 %v1645, %v1354
        %v1652 = vmul.f32 %v1641, %v1646
        %v1653 = vadd.f32 %v1651, %v1652
        %v1654 = vtanh.pop %v1653
        %v1655 = vmul.f32 %v1650, %v1654
        %s1656 = smul.u32 2, 4
        %s1657 = smul.addr %s1656, 8
        %s1658 = scalar_lea.vmem [#allocation2], %s1657
        %v1659 = vld [vmem:[%s1658] sm:$0xff]
        %v1660 = vld [vmem:[%s1658 + $0x8] sm:$0xff]
        %v1661 = vld [vmem:[%s1658 + $0x10] sm:$0xff]
        %v1662 = vld [vmem:[%s1658 + $0x18] sm:$0xff]
        %1663 = vmatprep.subr.bf16.mxu0 %v624
        %1664 = vmatpush1.bf16.msra.mxu0 %v623
        %1665 = vmatprep.subr.bf16.mxu0 %v620
        %1666 = vmatpush1.bf16.msra.mxu0 %v619
        %1667 = vmatprep.subr.bf16.mxu0 %v616
        %1668 = vmatpush1.bf16.msra.mxu0 %v615
        %1669 = vmatprep.subr.bf16.mxu0 %v612
        %1670 = vmatpush1.bf16.msra.mxu0 %v611
        %1671 = vmatprep.subr.bf16.mxu0 %v608
        %1672 = vmatpush1.bf16.msra.mxu0 %v607
        %1673 = vmatprep.subr.bf16.mxu0 %v604
        %1674 = vmatpush1.bf16.msra.mxu0 %v603
        %1675 = vmatprep.subr.bf16.mxu0 %v600
        %1676 = vmatpush1.bf16.msra.mxu0 %v599
        %1677 = vmatprep.subr.bf16.mxu0 %v596
        %1678 = vmatpush1.bf16.msra.mxu0 %v595
        %1679 = vmatprep.subr.bf16.mxu0 0
        %1680 = vmatpush2.bf16.msra.mxu0 0
        %1681 = vmatprep.subr.bf16.mxu0 0
        %1682 = vmatpush2.bf16.msra.mxu0 0
        %1683 = vmatprep.subr.bf16.mxu0 0
        %1684 = vmatpush2.bf16.msra.mxu0 0
        %1685 = vmatprep.subr.bf16.mxu0 0
        %1686 = vmatpush2.bf16.msra.mxu0 0
        %1687 = vmatprep.subr.bf16.mxu0 0
        %1688 = vmatpush2.bf16.msra.mxu0 0
        %1689 = vmatprep.subr.bf16.mxu0 0
        %1690 = vmatpush2.bf16.msra.mxu0 0
        %1691 = vmatprep.subr.bf16.mxu0 0
        %1692 = vmatpush2.bf16.msra.mxu0 0
        %1693 = vmatprep.subr.bf16.mxu0 0
        %1694 = vmatpush2.bf16.msra.mxu0 0
        %1695 = vmatprep.mubr.bf16.mxu0 0
        %1696 = vmatmul.mubr.bf16.gmra.mxu0 %v1468
        %v1697 = vpop.f32.mrf.mxu0
        %v1698 = vadd.f32 0.0, %v1697
        %v1699 = vpop.f32.mrf.mxu0
        %v1700 = vadd.f32 0.0, %v1699
        %v1701 = vpop.f32.mrf.mxu0
        %v1702 = vpop.f32.mrf.mxu0
        %1703 = vdwg.mxu0
        %1704 = vmatprep.subr.bf16.mxu0 %v626
        %1705 = vmatpush1.bf16.msra.mxu0 %v625
        %1706 = vmatprep.subr.bf16.mxu0 %v622
        %1707 = vmatpush1.bf16.msra.mxu0 %v621
        %1708 = vmatprep.subr.bf16.mxu0 %v618
        %1709 = vmatpush1.bf16.msra.mxu0 %v617
        %1710 = vmatprep.subr.bf16.mxu0 %v614
        %1711 = vmatpush1.bf16.msra.mxu0 %v613
        %1712 = vmatprep.subr.bf16.mxu0 %v610
        %1713 = vmatpush1.bf16.msra.mxu0 %v609
        %1714 = vmatprep.subr.bf16.mxu0 %v606
        %1715 = vmatpush1.bf16.msra.mxu0 %v605
        %1716 = vmatprep.subr.bf16.mxu0 %v602
        %1717 = vmatpush1.bf16.msra.mxu0 %v601
        %1718 = vmatprep.subr.bf16.mxu0 %v598
        %1719 = vmatpush1.bf16.msra.mxu0 %v597
        %1720 = vmatprep.subr.bf16.mxu0 0
        %1721 = vmatpush2.bf16.msra.mxu0 0
        %1722 = vmatprep.subr.bf16.mxu0 0
        %1723 = vmatpush2.bf16.msra.mxu0 0
        %1724 = vmatprep.subr.bf16.mxu0 0
        %1725 = vmatpush2.bf16.msra.mxu0 0
        %1726 = vmatprep.subr.bf16.mxu0 0
        %1727 = vmatpush2.bf16.msra.mxu0 0
        %1728 = vmatprep.subr.bf16.mxu0 0
        %1729 = vmatpush2.bf16.msra.mxu0 0
        %1730 = vmatprep.subr.bf16.mxu0 0
        %1731 = vmatpush2.bf16.msra.mxu0 0
        %1732 = vmatprep.subr.bf16.mxu0 0
        %1733 = vmatpush2.bf16.msra.mxu0 0
        %1734 = vmatprep.subr.bf16.mxu0 0
        %1735 = vmatpush2.bf16.msra.mxu0 0
        %1736 = vmatprep.mubr.bf16.mxu0 0
        %1737 = vmatmul.mubr.bf16.gmra.mxu0 %v1468
        %v1738 = vpop.f32.mrf.mxu0
        %v1739 = vadd.f32 0.0, %v1738
        %v1740 = vpop.f32.mrf.mxu0
        %v1741 = vadd.f32 0.0, %v1740
        %v1742 = vpop.f32.mrf.mxu0
        %v1743 = vpop.f32.mrf.mxu0
        %1744 = vdwg.mxu0
        %v1745 = vadd.f32 %v1659, %v1698
        %v1746 = vadd.f32 %v1660, %v1700
        %v1747 = vadd.f32 %v1661, %v1739
        %v1748 = vadd.f32 %v1662, %v1741
        %v1749 = vmul.f32 %v1745, 0.5
        %v1750 = vtanh.pop %v1749
        %v1751 = vmul.f32 %v1750, 0.5
        %v1752 = vadd.f32 %v1751, 0.5
        %v1753 = vmul.f32 %v1746, 0.5
        %v1754 = vtanh.pop %v1753
        %v1755 = vmul.f32 %v1754, 0.5
        %v1756 = vadd.f32 %v1755, 0.5
        %v1757 = vtanh.pop %v1747
        %v1758 = vmul.f32 %v1748, 0.5
        %v1759 = vtanh.pop %v1758
        %v1760 = vmul.f32 %v1759, 0.5
        %v1761 = vadd.f32 %v1760, 0.5
        %v1762 = vmul.f32 %v1756, %v1465
        %v1763 = vmul.f32 %v1752, %v1757
        %v1764 = vadd.f32 %v1762, %v1763
        %v1765 = vtanh.pop %v1764
        %v1766 = vmul.f32 %v1761, %v1765
        %v1767 = vpack.c.bf16 %v1766, %v1766
        %1768 = vmatprep.subr.bf16.mxu0 %v943
        %1769 = vmatpush1.bf16.msra.mxu0 %v942
        %1770 = vmatprep.subr.bf16.mxu0 %v939
        %1771 = vmatpush1.bf16.msra.mxu0 %v938
        %1772 = vmatprep.subr.bf16.mxu0 %v935
        %1773 = vmatpush1.bf16.msra.mxu0 %v934
        %1774 = vmatprep.subr.bf16.mxu0 %v931
        %1775 = vmatpush1.bf16.msra.mxu0 %v930
        %1776 = vmatprep.subr.bf16.mxu0 %v927
        %1777 = vmatpush1.bf16.msra.mxu0 %v926
        %1778 = vmatprep.subr.bf16.mxu0 %v923
        %1779 = vmatpush1.bf16.msra.mxu0 %v922
        %1780 = vmatprep.subr.bf16.mxu0 %v919
        %1781 = vmatpush1.bf16.msra.mxu0 %v918
        %1782 = vmatprep.subr.bf16.mxu0 %v915
        %1783 = vmatpush1.bf16.msra.mxu0 %v914
        %1784 = vmatprep.subr.bf16.mxu0 0
        %1785 = vmatpush2.bf16.msra.mxu0 0
        %1786 = vmatprep.subr.bf16.mxu0 0
        %1787 = vmatpush2.bf16.msra.mxu0 0
        %1788 = vmatprep.subr.bf16.mxu0 0
        %1789 = vmatpush2.bf16.msra.mxu0 0
        %1790 = vmatprep.subr.bf16.mxu0 0
        %1791 = vmatpush2.bf16.msra.mxu0 0
        %1792 = vmatprep.subr.bf16.mxu0 0
        %1793 = vmatpush2.bf16.msra.mxu0 0
        %1794 = vmatprep.subr.bf16.mxu0 0
        %1795 = vmatpush2.bf16.msra.mxu0 0
        %1796 = vmatprep.subr.bf16.mxu0 0
        %1797 = vmatpush2.bf16.msra.mxu0 0
        %1798 = vmatprep.subr.bf16.mxu0 0
        %1799 = vmatpush2.bf16.msra.mxu0 0
        %1800 = vmatprep.mubr.bf16.mxu0 0
        %1801 = vmatmul.mubr.bf16.gmra.mxu0 %v1767
        %v1802 = vpop.f32.mrf.mxu0
        %v1803 = vadd.f32 %v801, %v1802
        %v1804 = vpop.f32.mrf.mxu0
        %v1805 = vadd.f32 %v805, %v1804
        %v1806 = vpop.f32.mrf.mxu0
        %v1807 = vpop.f32.mrf.mxu0
        %1808 = vdwg.mxu0
        %1809 = vmatprep.subr.bf16.mxu0 %v945
        %1810 = vmatpush1.bf16.msra.mxu0 %v944
        %1811 = vmatprep.subr.bf16.mxu0 %v941
        %1812 = vmatpush1.bf16.msra.mxu0 %v940
        %1813 = vmatprep.subr.bf16.mxu0 %v937
        %1814 = vmatpush1.bf16.msra.mxu0 %v936
        %1815 = vmatprep.subr.bf16.mxu0 %v933
        %1816 = vmatpush1.bf16.msra.mxu0 %v932
        %1817 = vmatprep.subr.bf16.mxu0 %v929
        %1818 = vmatpush1.bf16.msra.mxu0 %v928
        %1819 = vmatprep.subr.bf16.mxu0 %v925
        %1820 = vmatpush1.bf16.msra.mxu0 %v924
        %1821 = vmatprep.subr.bf16.mxu0 %v921
        %1822 = vmatpush1.bf16.msra.mxu0 %v920
        %1823 = vmatprep.subr.bf16.mxu0 %v917
        %1824 = vmatpush1.bf16.msra.mxu0 %v916
        %1825 = vmatprep.subr.bf16.mxu0 0
        %1826 = vmatpush2.bf16.msra.mxu0 0
        %1827 = vmatprep.subr.bf16.mxu0 0
        %1828 = vmatpush2.bf16.msra.mxu0 0
        %1829 = vmatprep.subr.bf16.mxu0 0
        %1830 = vmatpush2.bf16.msra.mxu0 0
        %1831 = vmatprep.subr.bf16.mxu0 0
        %1832 = vmatpush2.bf16.msra.mxu0 0
        %1833 = vmatprep.subr.bf16.mxu0 0
        %1834 = vmatpush2.bf16.msra.mxu0 0
        %1835 = vmatprep.subr.bf16.mxu0 0
        %1836 = vmatpush2.bf16.msra.mxu0 0
        %1837 = vmatprep.subr.bf16.mxu0 0
        %1838 = vmatpush2.bf16.msra.mxu0 0
        %1839 = vmatprep.subr.bf16.mxu0 0
        %1840 = vmatpush2.bf16.msra.mxu0 0
        %1841 = vmatprep.mubr.bf16.mxu0 0
        %1842 = vmatmul.mubr.bf16.gmra.mxu0 %v1767
        %v1843 = vpop.f32.mrf.mxu0
        %v1844 = vadd.f32 %v809, %v1843
        %v1845 = vpop.f32.mrf.mxu0
        %v1846 = vadd.f32 %v813, %v1845
        %v1847 = vpop.f32.mrf.mxu0
        %v1848 = vpop.f32.mrf.mxu0
        %1849 = vdwg.mxu0
        %v1850 = vpack.c.bf16 %v1655, %v1655
        %1851 = vmatprep.subr.bf16.mxu0 %v1218
        %1852 = vmatpush1.bf16.msra.mxu0 %v1217
        %1853 = vmatprep.subr.bf16.mxu0 %v1214
        %1854 = vmatpush1.bf16.msra.mxu0 %v1213
        %1855 = vmatprep.subr.bf16.mxu0 %v1210
        %1856 = vmatpush1.bf16.msra.mxu0 %v1209
        %1857 = vmatprep.subr.bf16.mxu0 %v1206
        %1858 = vmatpush1.bf16.msra.mxu0 %v1205
        %1859 = vmatprep.subr.bf16.mxu0 %v1202
        %1860 = vmatpush1.bf16.msra.mxu0 %v1201
        %1861 = vmatprep.subr.bf16.mxu0 %v1198
        %1862 = vmatpush1.bf16.msra.mxu0 %v1197
        %1863 = vmatprep.subr.bf16.mxu0 %v1194
        %1864 = vmatpush1.bf16.msra.mxu0 %v1193
        %1865 = vmatprep.subr.bf16.mxu0 %v1190
        %1866 = vmatpush1.bf16.msra.mxu0 %v1189
        %1867 = vmatprep.subr.bf16.mxu0 0
        %1868 = vmatpush2.bf16.msra.mxu0 0
        %1869 = vmatprep.subr.bf16.mxu0 0
        %1870 = vmatpush2.bf16.msra.mxu0 0
        %1871 = vmatprep.subr.bf16.mxu0 0
        %1872 = vmatpush2.bf16.msra.mxu0 0
        %1873 = vmatprep.subr.bf16.mxu0 0
        %1874 = vmatpush2.bf16.msra.mxu0 0
        %1875 = vmatprep.subr.bf16.mxu0 0
        %1876 = vmatpush2.bf16.msra.mxu0 0
        %1877 = vmatprep.subr.bf16.mxu0 0
        %1878 = vmatpush2.bf16.msra.mxu0 0
        %1879 = vmatprep.subr.bf16.mxu0 0
        %1880 = vmatpush2.bf16.msra.mxu0 0
        %1881 = vmatprep.subr.bf16.mxu0 0
        %1882 = vmatpush2.bf16.msra.mxu0 0
        %1883 = vmatprep.mubr.bf16.mxu0 0
        %1884 = vmatmul.mubr.bf16.gmra.mxu0 %v1850
        %v1885 = vpop.f32.mrf.mxu0
        %v1886 = vadd.f32 0.0, %v1885
        %v1887 = vpop.f32.mrf.mxu0
        %v1888 = vadd.f32 0.0, %v1887
        %v1889 = vpop.f32.mrf.mxu0
        %v1890 = vpop.f32.mrf.mxu0
        %1891 = vdwg.mxu0
        %1892 = vmatprep.subr.bf16.mxu0 %v1220
        %1893 = vmatpush1.bf16.msra.mxu0 %v1219
        %1894 = vmatprep.subr.bf16.mxu0 %v1216
        %1895 = vmatpush1.bf16.msra.mxu0 %v1215
        %1896 = vmatprep.subr.bf16.mxu0 %v1212
        %1897 = vmatpush1.bf16.msra.mxu0 %v1211
        %1898 = vmatprep.subr.bf16.mxu0 %v1208
        %1899 = vmatpush1.bf16.msra.mxu0 %v1207
        %1900 = vmatprep.subr.bf16.mxu0 %v1204
        %1901 = vmatpush1.bf16.msra.mxu0 %v1203
        %1902 = vmatprep.subr.bf16.mxu0 %v1200
        %1903 = vmatpush1.bf16.msra.mxu0 %v1199
        %1904 = vmatprep.subr.bf16.mxu0 %v1196
        %1905 = vmatpush1.bf16.msra.mxu0 %v1195
        %1906 = vmatprep.subr.bf16.mxu0 %v1192
        %1907 = vmatpush1.bf16.msra.mxu0 %v1191
        %1908 = vmatprep.subr.bf16.mxu0 0
        %1909 = vmatpush2.bf16.msra.mxu0 0
        %1910 = vmatprep.subr.bf16.mxu0 0
        %1911 = vmatpush2.bf16.msra.mxu0 0
        %1912 = vmatprep.subr.bf16.mxu0 0
        %1913 = vmatpush2.bf16.msra.mxu0 0
        %1914 = vmatprep.subr.bf16.mxu0 0
        %1915 = vmatpush2.bf16.msra.mxu0 0
        %1916 = vmatprep.subr.bf16.mxu0 0
        %1917 = vmatpush2.bf16.msra.mxu0 0
        %1918 = vmatprep.subr.bf16.mxu0 0
        %1919 = vmatpush2.bf16.msra.mxu0 0
        %1920 = vmatprep.subr.bf16.mxu0 0
        %1921 = vmatpush2.bf16.msra.mxu0 0
        %1922 = vmatprep.subr.bf16.mxu0 0
        %1923 = vmatpush2.bf16.msra.mxu0 0
        %1924 = vmatprep.mubr.bf16.mxu0 0
        %1925 = vmatmul.mubr.bf16.gmra.mxu0 %v1850
        %v1926 = vpop.f32.mrf.mxu0
        %v1927 = vadd.f32 0.0, %v1926
        %v1928 = vpop.f32.mrf.mxu0
        %v1929 = vadd.f32 0.0, %v1928
        %v1930 = vpop.f32.mrf.mxu0
        %v1931 = vpop.f32.mrf.mxu0
        %1932 = vdwg.mxu0
        %v1933 = vadd.f32 %v1803, %v1886
        %v1934 = vadd.f32 %v1805, %v1888
        %v1935 = vadd.f32 %v1844, %v1927
        %v1936 = vadd.f32 %v1846, %v1929
        %v1937 = vmul.f32 %v1933, 0.5
        %v1938 = vtanh.pop %v1937
        %v1939 = vmul.f32 %v1938, 0.5
        %v1940 = vadd.f32 %v1939, 0.5
        %v1941 = vmul.f32 %v1934, 0.5
        %v1942 = vtanh.pop %v1941
        %v1943 = vmul.f32 %v1942, 0.5
        %v1944 = vadd.f32 %v1943, 0.5
        %v1945 = vtanh.pop %v1935
        %v1946 = vmul.f32 %v1936, 0.5
        %v1947 = vtanh.pop %v1946
        %v1948 = vmul.f32 %v1947, 0.5
        %v1949 = vadd.f32 %v1948, 0.5
        %v1950 = vmul.f32 %v1944, %v1653
        %v1951 = vmul.f32 %v1940, %v1945
        %v1952 = vadd.f32 %v1950, %v1951
        %v1953 = vtanh.pop %v1952
        %v1954 = vmul.f32 %v1949, %v1953
        %s1955 = smul.u32 3, 4
        %s1956 = smul.addr %s1955, 8
        %s1957 = scalar_lea.vmem [#allocation2], %s1956
        %v1958 = vld [vmem:[%s1957] sm:$0xff]
        %v1959 = vld [vmem:[%s1957 + $0x8] sm:$0xff]
        %v1960 = vld [vmem:[%s1957 + $0x10] sm:$0xff]
        %v1961 = vld [vmem:[%s1957 + $0x18] sm:$0xff]
        %1962 = vmatprep.subr.bf16.mxu0 %v624
        %1963 = vmatpush1.bf16.msra.mxu0 %v623
        %1964 = vmatprep.subr.bf16.mxu0 %v620
        %1965 = vmatpush1.bf16.msra.mxu0 %v619
        %1966 = vmatprep.subr.bf16.mxu0 %v616
        %1967 = vmatpush1.bf16.msra.mxu0 %v615
        %1968 = vmatprep.subr.bf16.mxu0 %v612
        %1969 = vmatpush1.bf16.msra.mxu0 %v611
        %1970 = vmatprep.subr.bf16.mxu0 %v608
        %1971 = vmatpush1.bf16.msra.mxu0 %v607
        %1972 = vmatprep.subr.bf16.mxu0 %v604
        %1973 = vmatpush1.bf16.msra.mxu0 %v603
        %1974 = vmatprep.subr.bf16.mxu0 %v600
        %1975 = vmatpush1.bf16.msra.mxu0 %v599
        %1976 = vmatprep.subr.bf16.mxu0 %v596
        %1977 = vmatpush1.bf16.msra.mxu0 %v595
        %1978 = vmatprep.subr.bf16.mxu0 0
        %1979 = vmatpush2.bf16.msra.mxu0 0
        %1980 = vmatprep.subr.bf16.mxu0 0
        %1981 = vmatpush2.bf16.msra.mxu0 0
        %1982 = vmatprep.subr.bf16.mxu0 0
        %1983 = vmatpush2.bf16.msra.mxu0 0
        %1984 = vmatprep.subr.bf16.mxu0 0
        %1985 = vmatpush2.bf16.msra.mxu0 0
        %1986 = vmatprep.subr.bf16.mxu0 0
        %1987 = vmatpush2.bf16.msra.mxu0 0
        %1988 = vmatprep.subr.bf16.mxu0 0
        %1989 = vmatpush2.bf16.msra.mxu0 0
        %1990 = vmatprep.subr.bf16.mxu0 0
        %1991 = vmatpush2.bf16.msra.mxu0 0
        %1992 = vmatprep.subr.bf16.mxu0 0
        %1993 = vmatpush2.bf16.msra.mxu0 0
        %1994 = vmatprep.mubr.bf16.mxu0 0
        %1995 = vmatmul.mubr.bf16.gmra.mxu0 %v1767
        %v1996 = vpop.f32.mrf.mxu0
        %v1997 = vadd.f32 0.0, %v1996
        %v1998 = vpop.f32.mrf.mxu0
        %v1999 = vadd.f32 0.0, %v1998
        %v2000 = vpop.f32.mrf.mxu0
        %v2001 = vpop.f32.mrf.mxu0
        %2002 = vdwg.mxu0
        %2003 = vmatprep.subr.bf16.mxu0 %v626
        %2004 = vmatpush1.bf16.msra.mxu0 %v625
        %2005 = vmatprep.subr.bf16.mxu0 %v622
        %2006 = vmatpush1.bf16.msra.mxu0 %v621
        %2007 = vmatprep.subr.bf16.mxu0 %v618
        %2008 = vmatpush1.bf16.msra.mxu0 %v617
        %2009 = vmatprep.subr.bf16.mxu0 %v614
        %2010 = vmatpush1.bf16.msra.mxu0 %v613
        %2011 = vmatprep.subr.bf16.mxu0 %v610
        %2012 = vmatpush1.bf16.msra.mxu0 %v609
        %2013 = vmatprep.subr.bf16.mxu0 %v606
        %2014 = vmatpush1.bf16.msra.mxu0 %v605
        %2015 = vmatprep.subr.bf16.mxu0 %v602
        %2016 = vmatpush1.bf16.msra.mxu0 %v601
        %2017 = vmatprep.subr.bf16.mxu0 %v598
        %2018 = vmatpush1.bf16.msra.mxu0 %v597
        %2019 = vmatprep.subr.bf16.mxu0 0
        %2020 = vmatpush2.bf16.msra.mxu0 0
        %2021 = vmatprep.subr.bf16.mxu0 0
        %2022 = vmatpush2.bf16.msra.mxu0 0
        %2023 = vmatprep.subr.bf16.mxu0 0
        %2024 = vmatpush2.bf16.msra.mxu0 0
        %2025 = vmatprep.subr.bf16.mxu0 0
        %2026 = vmatpush2.bf16.msra.mxu0 0
        %2027 = vmatprep.subr.bf16.mxu0 0
        %2028 = vmatpush2.bf16.msra.mxu0 0
        %2029 = vmatprep.subr.bf16.mxu0 0
        %2030 = vmatpush2.bf16.msra.mxu0 0
        %2031 = vmatprep.subr.bf16.mxu0 0
        %2032 = vmatpush2.bf16.msra.mxu0 0
        %2033 = vmatprep.subr.bf16.mxu0 0
        %2034 = vmatpush2.bf16.msra.mxu0 0
        %2035 = vmatprep.mubr.bf16.mxu0 0
        %2036 = vmatmul.mubr.bf16.gmra.mxu0 %v1767
        %v2037 = vpop.f32.mrf.mxu0
        %v2038 = vadd.f32 0.0, %v2037
        %v2039 = vpop.f32.mrf.mxu0
        %v2040 = vadd.f32 0.0, %v2039
        %v2041 = vpop.f32.mrf.mxu0
        %v2042 = vpop.f32.mrf.mxu0
        %2043 = vdwg.mxu0
        %v2044 = vadd.f32 %v1958, %v1997
        %v2045 = vadd.f32 %v1959, %v1999
        %v2046 = vadd.f32 %v1960, %v2038
        %v2047 = vadd.f32 %v1961, %v2040
        %v2048 = vmul.f32 %v2044, 0.5
        %v2049 = vtanh.pop %v2048
        %v2050 = vmul.f32 %v2049, 0.5
        %v2051 = vadd.f32 %v2050, 0.5
        %v2052 = vmul.f32 %v2045, 0.5
        %v2053 = vtanh.pop %v2052
        %v2054 = vmul.f32 %v2053, 0.5
        %v2055 = vadd.f32 %v2054, 0.5
        %v2056 = vtanh.pop %v2046
        %v2057 = vmul.f32 %v2047, 0.5
        %v2058 = vtanh.pop %v2057
        %v2059 = vmul.f32 %v2058, 0.5
        %v2060 = vadd.f32 %v2059, 0.5
        %v2061 = vmul.f32 %v2055, %v1764
        %v2062 = vmul.f32 %v2051, %v2056
        %v2063 = vadd.f32 %v2061, %v2062
        %v2064 = vtanh.pop %v2063
        %v2065 = vmul.f32 %v2060, %v2064
        %v2066 = vpack.c.bf16 %v2065, %v2065
        %2067 = vmatprep.subr.bf16.mxu0 %v943
        %2068 = vmatpush1.bf16.msra.mxu0 %v942
        %2069 = vmatprep.subr.bf16.mxu0 %v939
        %2070 = vmatpush1.bf16.msra.mxu0 %v938
        %2071 = vmatprep.subr.bf16.mxu0 %v935
        %2072 = vmatpush1.bf16.msra.mxu0 %v934
        %2073 = vmatprep.subr.bf16.mxu0 %v931
        %2074 = vmatpush1.bf16.msra.mxu0 %v930
        %2075 = vmatprep.subr.bf16.mxu0 %v927
        %2076 = vmatpush1.bf16.msra.mxu0 %v926
        %2077 = vmatprep.subr.bf16.mxu0 %v923
        %2078 = vmatpush1.bf16.msra.mxu0 %v922
        %2079 = vmatprep.subr.bf16.mxu0 %v919
        %2080 = vmatpush1.bf16.msra.mxu0 %v918
        %2081 = vmatprep.subr.bf16.mxu0 %v915
        %2082 = vmatpush1.bf16.msra.mxu0 %v914
        %2083 = vmatprep.subr.bf16.mxu0 0
        %2084 = vmatpush2.bf16.msra.mxu0 0
        %2085 = vmatprep.subr.bf16.mxu0 0
        %2086 = vmatpush2.bf16.msra.mxu0 0
        %2087 = vmatprep.subr.bf16.mxu0 0
        %2088 = vmatpush2.bf16.msra.mxu0 0
        %2089 = vmatprep.subr.bf16.mxu0 0
        %2090 = vmatpush2.bf16.msra.mxu0 0
        %2091 = vmatprep.subr.bf16.mxu0 0
        %2092 = vmatpush2.bf16.msra.mxu0 0
        %2093 = vmatprep.subr.bf16.mxu0 0
        %2094 = vmatpush2.bf16.msra.mxu0 0
        %2095 = vmatprep.subr.bf16.mxu0 0
        %2096 = vmatpush2.bf16.msra.mxu0 0
        %2097 = vmatprep.subr.bf16.mxu0 0
        %2098 = vmatpush2.bf16.msra.mxu0 0
        %2099 = vmatprep.mubr.bf16.mxu0 0
        %2100 = vmatmul.mubr.bf16.gmra.mxu0 %v2066
        %v2101 = vpop.f32.mrf.mxu0
        %v2102 = vadd.f32 %v801, %v2101
        %v2103 = vpop.f32.mrf.mxu0
        %v2104 = vadd.f32 %v805, %v2103
        %v2105 = vpop.f32.mrf.mxu0
        %v2106 = vpop.f32.mrf.mxu0
        %2107 = vdwg.mxu0
        %2108 = vmatprep.subr.bf16.mxu0 %v945
        %2109 = vmatpush1.bf16.msra.mxu0 %v944
        %2110 = vmatprep.subr.bf16.mxu0 %v941
        %2111 = vmatpush1.bf16.msra.mxu0 %v940
        %2112 = vmatprep.subr.bf16.mxu0 %v937
        %2113 = vmatpush1.bf16.msra.mxu0 %v936
        %2114 = vmatprep.subr.bf16.mxu0 %v933
        %2115 = vmatpush1.bf16.msra.mxu0 %v932
        %2116 = vmatprep.subr.bf16.mxu0 %v929
        %2117 = vmatpush1.bf16.msra.mxu0 %v928
        %2118 = vmatprep.subr.bf16.mxu0 %v925
        %2119 = vmatpush1.bf16.msra.mxu0 %v924
        %2120 = vmatprep.subr.bf16.mxu0 %v921
        %2121 = vmatpush1.bf16.msra.mxu0 %v920
        %2122 = vmatprep.subr.bf16.mxu0 %v917
        %2123 = vmatpush1.bf16.msra.mxu0 %v916
        %2124 = vmatprep.subr.bf16.mxu0 0
        %2125 = vmatpush2.bf16.msra.mxu0 0
        %2126 = vmatprep.subr.bf16.mxu0 0
        %2127 = vmatpush2.bf16.msra.mxu0 0
        %2128 = vmatprep.subr.bf16.mxu0 0
        %2129 = vmatpush2.bf16.msra.mxu0 0
        %2130 = vmatprep.subr.bf16.mxu0 0
        %2131 = vmatpush2.bf16.msra.mxu0 0
        %2132 = vmatprep.subr.bf16.mxu0 0
        %2133 = vmatpush2.bf16.msra.mxu0 0
        %2134 = vmatprep.subr.bf16.mxu0 0
        %2135 = vmatpush2.bf16.msra.mxu0 0
        %2136 = vmatprep.subr.bf16.mxu0 0
        %2137 = vmatpush2.bf16.msra.mxu0 0
        %2138 = vmatprep.subr.bf16.mxu0 0
        %2139 = vmatpush2.bf16.msra.mxu0 0
        %2140 = vmatprep.mubr.bf16.mxu0 0
        %2141 = vmatmul.mubr.bf16.gmra.mxu0 %v2066
        %v2142 = vpop.f32.mrf.mxu0
        %v2143 = vadd.f32 %v809, %v2142
        %v2144 = vpop.f32.mrf.mxu0
        %v2145 = vadd.f32 %v813, %v2144
        %v2146 = vpop.f32.mrf.mxu0
        %v2147 = vpop.f32.mrf.mxu0
        %2148 = vdwg.mxu0
        %v2149 = vpack.c.bf16 %v1954, %v1954
        %2150 = vmatprep.subr.bf16.mxu0 %v1218
        %2151 = vmatpush1.bf16.msra.mxu0 %v1217
        %2152 = vmatprep.subr.bf16.mxu0 %v1214
        %2153 = vmatpush1.bf16.msra.mxu0 %v1213
        %2154 = vmatprep.subr.bf16.mxu0 %v1210
        %2155 = vmatpush1.bf16.msra.mxu0 %v1209
        %2156 = vmatprep.subr.bf16.mxu0 %v1206
        %2157 = vmatpush1.bf16.msra.mxu0 %v1205
        %2158 = vmatprep.subr.bf16.mxu0 %v1202
        %2159 = vmatpush1.bf16.msra.mxu0 %v1201
        %2160 = vmatprep.subr.bf16.mxu0 %v1198
        %2161 = vmatpush1.bf16.msra.mxu0 %v1197
        %2162 = vmatprep.subr.bf16.mxu0 %v1194
        %2163 = vmatpush1.bf16.msra.mxu0 %v1193
        %2164 = vmatprep.subr.bf16.mxu0 %v1190
        %2165 = vmatpush1.bf16.msra.mxu0 %v1189
        %2166 = vmatprep.subr.bf16.mxu0 0
        %2167 = vmatpush2.bf16.msra.mxu0 0
        %2168 = vmatprep.subr.bf16.mxu0 0
        %2169 = vmatpush2.bf16.msra.mxu0 0
        %2170 = vmatprep.subr.bf16.mxu0 0
        %2171 = vmatpush2.bf16.msra.mxu0 0
        %2172 = vmatprep.subr.bf16.mxu0 0
        %2173 = vmatpush2.bf16.msra.mxu0 0
        %2174 = vmatprep.subr.bf16.mxu0 0
        %2175 = vmatpush2.bf16.msra.mxu0 0
        %2176 = vmatprep.subr.bf16.mxu0 0
        %2177 = vmatpush2.bf16.msra.mxu0 0
        %2178 = vmatprep.subr.bf16.mxu0 0
        %2179 = vmatpush2.bf16.msra.mxu0 0
        %2180 = vmatprep.subr.bf16.mxu0 0
        %2181 = vmatpush2.bf16.msra.mxu0 0
        %2182 = vmatprep.mubr.bf16.mxu0 0
        %2183 = vmatmul.mubr.bf16.gmra.mxu0 %v2149
        %v2184 = vpop.f32.mrf.mxu0
        %v2185 = vadd.f32 0.0, %v2184
        %v2186 = vpop.f32.mrf.mxu0
        %v2187 = vadd.f32 0.0, %v2186
        %v2188 = vpop.f32.mrf.mxu0
        %v2189 = vpop.f32.mrf.mxu0
        %2190 = vdwg.mxu0
        %2191 = vmatprep.subr.bf16.mxu0 %v1220
        %2192 = vmatpush1.bf16.msra.mxu0 %v1219
        %2193 = vmatprep.subr.bf16.mxu0 %v1216
        %2194 = vmatpush1.bf16.msra.mxu0 %v1215
        %2195 = vmatprep.subr.bf16.mxu0 %v1212
        %2196 = vmatpush1.bf16.msra.mxu0 %v1211
        %2197 = vmatprep.subr.bf16.mxu0 %v1208
        %2198 = vmatpush1.bf16.msra.mxu0 %v1207
        %2199 = vmatprep.subr.bf16.mxu0 %v1204
        %2200 = vmatpush1.bf16.msra.mxu0 %v1203
        %2201 = vmatprep.subr.bf16.mxu0 %v1200
        %2202 = vmatpush1.bf16.msra.mxu0 %v1199
        %2203 = vmatprep.subr.bf16.mxu0 %v1196
        %2204 = vmatpush1.bf16.msra.mxu0 %v1195
        %2205 = vmatprep.subr.bf16.mxu0 %v1192
        %2206 = vmatpush1.bf16.msra.mxu0 %v1191
        %2207 = vmatprep.subr.bf16.mxu0 0
        %2208 = vmatpush2.bf16.msra.mxu0 0
        %2209 = vmatprep.subr.bf16.mxu0 0
        %2210 = vmatpush2.bf16.msra.mxu0 0
        %2211 = vmatprep.subr.bf16.mxu0 0
        %2212 = vmatpush2.bf16.msra.mxu0 0
        %2213 = vmatprep.subr.bf16.mxu0 0
        %2214 = vmatpush2.bf16.msra.mxu0 0
        %2215 = vmatprep.subr.bf16.mxu0 0
        %2216 = vmatpush2.bf16.msra.mxu0 0
        %2217 = vmatprep.subr.bf16.mxu0 0
        %2218 = vmatpush2.bf16.msra.mxu0 0
        %2219 = vmatprep.subr.bf16.mxu0 0
        %2220 = vmatpush2.bf16.msra.mxu0 0
        %2221 = vmatprep.subr.bf16.mxu0 0
        %2222 = vmatpush2.bf16.msra.mxu0 0
        %2223 = vmatprep.mubr.bf16.mxu0 0
        %2224 = vmatmul.mubr.bf16.gmra.mxu0 %v2149
        %v2225 = vpop.f32.mrf.mxu0
        %v2226 = vadd.f32 0.0, %v2225
        %v2227 = vpop.f32.mrf.mxu0
        %v2228 = vadd.f32 0.0, %v2227
        %v2229 = vpop.f32.mrf.mxu0
        %v2230 = vpop.f32.mrf.mxu0
        %2231 = vdwg.mxu0
        %v2232 = vadd.f32 %v2102, %v2185
        %v2233 = vadd.f32 %v2104, %v2187
        %v2234 = vadd.f32 %v2143, %v2226
        %v2235 = vadd.f32 %v2145, %v2228
        %v2236 = vmul.f32 %v2232, 0.5
        %v2237 = vtanh.pop %v2236
        %v2238 = vmul.f32 %v2237, 0.5
        %v2239 = vadd.f32 %v2238, 0.5
        %v2240 = vmul.f32 %v2233, 0.5
        %v2241 = vtanh.pop %v2240
        %v2242 = vmul.f32 %v2241, 0.5
        %v2243 = vadd.f32 %v2242, 0.5
        %v2244 = vtanh.pop %v2234
        %v2245 = vmul.f32 %v2235, 0.5
        %v2246 = vtanh.pop %v2245
        %v2247 = vmul.f32 %v2246, 0.5
        %v2248 = vadd.f32 %v2247, 0.5
        %v2249 = vmul.f32 %v2243, %v1952
        %v2250 = vmul.f32 %v2239, %v2244
        %v2251 = vadd.f32 %v2249, %v2250
        %v2252 = vtanh.pop %v2251
        %v2253 = vmul.f32 %v2248, %v2252
        %2254 = vst [vmem:[#allocation3] sm:$0xff] %v2065
        %2255 = vst [vmem:[#allocation4] sm:$0xff] %v2063
        %2256 = vst [vmem:[#allocation5] sm:$0xff] %v2253
        %2257 = vst [vmem:[#allocation6] sm:$0xff] %v2251
        %2258 = vst [vmem:[%s7] sm:$0xff] %v2253
        // Predicated region
        $region65: #{encoder_forward.1} parent=47 // pred_check
          %p2259 = pneg %p185
        $region66: #{encoder_forward.1} parent=47 // pred_check_branch
          %2261 = sbr.rel (%p2259) target = $region68
        $region67: #{encoder_forward.1} parent=47 // pred_region
          _
        $region68: #{encoder_forward.1} parent=47 // pred_fallthru
          _
        // Predicated region
        $region69: #{encoder_forward.1} parent=47 // pred_check
          %p2262 = pneg %p185
        $region70: #{encoder_forward.1} parent=47 // pred_check_branch
          %2264 = sbr.rel (%p2262) target = $region72
        $region71: #{encoder_forward.1} parent=47 // pred_region
          _
        $region72: #{encoder_forward.1} parent=47 // pred_fallthru
          _
      $region48: #{encoder_forward.1} parent=5 // pred_fallthru
        _
      %p2265 = scmp.le.s32.totalorder 2, %s15
      // Predicated region
      $region73: #{encoder_forward.1} parent=5 // pred_check
        %p2266 = pneg %p2265
      $region74: #{encoder_forward.1} parent=5 // pred_check_branch
        %2268 = sbr.rel (%p2266) target = $region76
      $region75: #{encoder_forward.1} parent=5 // pred_region
        %s2269 = ssub.s32 %s15, 2
      $region76: #{encoder_forward.1} parent=5 // pred_fallthru
        _
    $region6: #{encoder_forward.1} parent=1 // loop_footer
      %s19 = sadd.s32 1, %s15
    $region7: #{encoder_forward.1} parent=1 // loop_footer_branch
      %14 = sbr.rel target = $region3
    $region8: #{encoder_forward.1} parent=1 // loop_exit
      _
    %2270 = vsyncpa [#allocation8], 1
    %s2271 = scalar_lea.sflag [#allocation8], 1
    %2272 = vsyncpa %s2271, 1
    %2273 = vsyncpa [#allocation10], 1

</llo_original>
